<compile_context>
chip_gen: v7x
topology: tpu7x:2x2x1
jax: 0.10.0
libtpu: 0.0.40
codegen_flags: <defaults>
</compile_context>

<pallas_src>
import functools

import jax
import jax.numpy as jnp
from jax import lax
from jax.experimental import pallas as pl
from jax.experimental.pallas import tpu as pltpu


def _decoder_kernel(x_ref, w1_ref, b1_ref, w2_ref, b2_ref, out_ref, *, hout, wout):
    hw = hout * wout

    # ---- boundary masks: built once, reused by both convs (spatial axis = lanes) ------
    pos = lax.broadcasted_iota(jnp.int32, (1, hw), 1)        # flat position y*W + x
    xcoord = pos % wout
    vx = {-1: jnp.where(xcoord >= 1, 1.0, 0.0),              # x-1 stays inside the row
          0: None,
          1: jnp.where(xcoord < wout - 1, 1.0, 0.0)}         # x+1 stays inside the row
    vy = {-1: jnp.where(pos >= wout, 1.0, 0.0),              # y-1 stays inside the image
          0: None,
          1: jnp.where(pos < hw - wout, 1.0, 0.0)}           # y+1 stays inside the image

    def conv3x3(act, w_ref_, b_ref_, operand_dtype):
        # act: (C_in, HW) f32.  w_ref_: (3, C_out, 3*C_in) taps (kh rows, kw blocks along
        # the input-channel axis in dx = -1, 0, +1 order).  Returns (C_out, HW) f32.
        acc = None
        for dy in (-1, 0, 1):
            base = act if dy == 0 else pltpu.roll(act, shift=(-dy * wout) % hw, axis=1)
            pieces = []
            for dx in (-1, 0, 1):
                p = base if dx == 0 else pltpu.roll(base, shift=(-dx) % hw, axis=1)
                if vx[dx] is not None:
                    p = p * vx[dx]                    # zero columns where x+dx is outside
                pieces.append(p)
            # the 3 dx-shifted views stacked along channels -> a single K=3*C_in matmul
            rhs = jnp.concatenate(pieces, axis=0).astype(operand_dtype)      # (3*C_in, HW)
            contrib = jnp.dot(w_ref_[dy + 1].astype(operand_dtype), rhs,
                              preferred_element_type=jnp.float32)            # (C_out, HW)
            if vy[dy] is not None:
                contrib = contrib * vy[dy]            # zero columns where y+dy is outside
            acc = contrib if acc is None else acc + contrib
        return acc + b_ref_[...]                      # (C_out, 1) bias broadcast over lanes

    inv_hw = 1.0 / float(hw)

    def inst_norm_relu(a):
        # nn.InstanceNorm2d defaults: eps=1e-5, affine=False, biased variance over HW.
        # One-pass statistics (sum, sum of squares) in f32.
        s = jnp.sum(a, axis=1, keepdims=True)
        ss = jnp.sum(a * a, axis=1, keepdims=True)
        mean = s * inv_hw
        var = ss * inv_hw - mean * mean
        y = (a - mean) * lax.rsqrt(var + 1e-5)
        return jnp.maximum(y, 0.0)

    act0 = x_ref[0].astype(jnp.float32)                                   # (C_in, HW)
    h1 = inst_norm_relu(conv3x3(act0, w1_ref, b1_ref, jnp.bfloat16))      # (C_in, HW)
    # conv2 is ~0.3% of the FLOPs; keep its operands f32 for tight parity with the module.
    h2 = inst_norm_relu(conv3x3(h1, w2_ref, b2_ref, jnp.float32))         # (C_out, HW)
    out_ref[0] = h2                                                       # lane-dense store


def _fuse_taps(w, dtype):
    """torch Conv2d weight (C_out, C_in, 3, 3) -> (3, C_out, 3*C_in) fused taps.

    Row kh holds the three kw taps concatenated along the input-channel axis in
    dx = -1, 0, +1 order, matching the kernel's RHS concatenation."""
    co, ci = w.shape[0], w.shape[1]
    return jnp.transpose(w, (2, 0, 3, 1)).reshape(3, co, 3 * ci).astype(dtype)


def segnet_depth_decoder_forward(params, inputs, masks):
    """Mirrors SegnetDepthDecoder.forward((features, indices, unpool_shape), masks)."""
    x, indices, unpool_shape = inputs
    n, cin, hin, win = x.shape
    hout, wout = int(unpool_shape[2]), int(unpool_shape[3])
    assert hout == 2 * hin and wout == 2 * win
    hw = hout * wout
    cout = params["w2"].shape[0]

    # ---- MaxUnpool2d(2,2) fused into XLA glue: nearest-2x upsample of features and
    # pooling indices, keep a value only at the flat position its index points to.
    # (Valid because MaxPool2d(2,2) indices always lie inside their own 2x2 window.)
    x_up = jnp.repeat(jnp.repeat(x.astype(jnp.float32), 2, axis=2), 2, axis=3)
    idx_up = jnp.repeat(jnp.repeat(indices.astype(jnp.int32), 2, axis=2), 2, axis=3)
    pos = (jnp.arange(hout, dtype=jnp.int32)[:, None] * wout
           + jnp.arange(wout, dtype=jnp.int32)[None, :])
    unpooled = jnp.where(idx_up == pos[None, None], x_up, 0.0)
    # single bf16 activation stream: channels on sublanes, flat spatial on lanes (NCHW order)
    feats = unpooled.reshape(n, cin, hw).astype(jnp.bfloat16)

    w1 = _fuse_taps(params["w1"], jnp.bfloat16)                    # (3, cin, 3*cin)
    b1 = params["b1"].reshape(cin, 1).astype(jnp.float32)
    w2 = _fuse_taps(params["w2"], jnp.float32)                     # (3, cout, 3*cin)
    b2 = params["b2"].reshape(cout, 1).astype(jnp.float32)

    kernel = functools.partial(_decoder_kernel, hout=hout, wout=wout)

    # NOTE: one whole image per grid step (fits easily at these sizes). At large decoder
    # resolutions (esp. v7x's 64 MiB VMEM) add a spatial grid axis with two-phase
    # InstanceNorm accumulators to bound per-step VMEM and feed both TensorCores.
    out = pl.pallas_call(
        kernel,
        out_shape=jax.ShapeDtypeStruct((n, cout, hw), jnp.float32),
        grid_spec=pltpu.PrefetchScalarGridSpec(
            num_scalar_prefetch=0,
            grid=(n,),
            in_specs=[
                pl.BlockSpec((1, cin, hw), lambda b: (b, 0, 0)),        # bf16 activations
                pl.BlockSpec((3, cin, 3 * cin), lambda b: (0, 0, 0)),   # conv1 fused taps
                pl.BlockSpec((cin, 1), lambda b: (0, 0)),               # conv1 bias
                pl.BlockSpec((3, cout, 3 * cin), lambda b: (0, 0, 0)),  # conv2 fused taps
                pl.BlockSpec((cout, 1), lambda b: (0, 0)),              # conv2 bias
            ],
            out_specs=pl.BlockSpec((1, cout, hw), lambda b: (b, 0, 0)),
        ),
        compiler_params=pltpu.CompilerParams(
            dimension_semantics=("parallel",),
            vmem_limit_bytes=64 * 1024 * 1024,
        ),
    )(feats, w1, b1, w2, b2)

    depth = out.reshape(n, cout, hout, wout)      # already NCHW-ordered: reshape only
    return depth, masks


# ---- pure-JAX reference (for correctness check only) --------------------------------
def reference_forward(params, inputs, masks, conv1_operand_dtype=jnp.float32):
    """conv1_operand_dtype=bf16 mirrors the kernel's MXU operand dtype for conv1."""
    x, indices, unpool_shape = inputs
    n, cin, hin, win = x.shape
    hout, wout = int(unpool_shape[2]), int(unpool_shape[3])

    up = jnp.zeros((n, cin, hout * wout), jnp.float32)
    ni = jnp.arange(n)[:, None, None]
    ci = jnp.arange(cin)[None, :, None]
    up = up.at[ni, ci, indices.reshape(n, cin, -1)].set(x.reshape(n, cin, -1))
    up = up.reshape(n, cin, hout, wout)

    def conv_in_relu(a, w, b, operand_dtype):
        y = lax.conv_general_dilated(
            a.astype(operand_dtype), w.astype(operand_dtype), (1, 1), "SAME",
            dimension_numbers=("NCHW", "OIHW", "NCHW"),
            preferred_element_type=jnp.float32)
        y = y + b.astype(jnp.float32)[None, :, None, None]
        mean = jnp.mean(y, axis=(2, 3), keepdims=True)
        var = jnp.var(y, axis=(2, 3), keepdims=True)
        y = (y - mean) / jnp.sqrt(var + 1e-5)
        return jnp.maximum(y, 0.0)

    d = conv_in_relu(up, params["w1"], params["b1"], conv1_operand_dtype)
    d = conv_in_relu(d, params["w2"], params["b2"], jnp.float32)
    return d, masks


if __name__ == "__main__":
    key = jax.random.PRNGKey(0)
    k1, k2, k3, k4, kx, ki, km = jax.random.split(key, 7)

    cin, cout = 64, 2                      # SegnetDepthDecoder(in_channels=64) -> 2
    n, hin, win = 2, 8, 8
    hout, wout = 2 * hin, 2 * win

    params = {
        "w1": jax.random.normal(k1, (cin, cin, 3, 3), jnp.float32) * 0.05,
        "b1": jax.random.normal(k2, (cin,), jnp.float32) * 0.05,
        "w2": jax.random.normal(k3, (cout, cin, 3, 3), jnp.float32) * 0.05,
        "b2": jax.random.normal(k4, (cout,), jnp.float32) * 0.05,
    }

    x = jax.random.normal(kx, (n, cin, hin, win), jnp.float32)
    # synthetic MaxPool2d(2,2,return_indices=True) indices: one position per 2x2 window
    off = jax.random.randint(ki, (n, cin, hin, win), 0, 4)
    oy, ox = off // 2, off % 2
    ys = 2 * jnp.arange(hin)[None, None, :, None] + oy
    xs = 2 * jnp.arange(win)[None, None, None, :] + ox
    indices = (ys * wout + xs).astype(jnp.int32)

    masks = jax.random.normal(km, (n, 1, hout, wout), jnp.float32)
    unpool_shape = (n, cin, hout, wout)
    inputs = (x, indices, unpool_shape)

    depth, masks_out = segnet_depth_decoder_forward(params, inputs, masks)
    depth = jax.block_until_ready(depth)
    assert depth.shape == (n, cout, hout, wout)
    assert bool(jnp.all(masks_out == masks))

    # kernel-math check: reference using the same bf16 conv1 operands / f32 accumulation
    ref_bf, _ = reference_forward(params, inputs, masks, conv1_operand_dtype=jnp.bfloat16)
    err_bf = float(jnp.max(jnp.abs(depth - ref_bf)))
    assert err_bf < 1e-3, f"mismatch vs bf16-operand reference: {err_bf}"

    # end-to-end deviation from the pure-f32 (PyTorch-equivalent) reference: only the
    # bf16 rounding of conv1's MXU operands contributes here.
    ref_f32, _ = reference_forward(params, inputs, masks)
    err_f32 = float(jnp.max(jnp.abs(depth - ref_f32)))
    assert err_f32 < 3e-2, f"excessive bf16 deviation vs f32 reference: {err_f32}"

    print("KERNEL_OK")
</pallas_src>

<mosaic_0001>
module attributes {stable_mosaic.version = 11 : i64} {
  func.func @_decoder_kernel(%arg0: i32, %arg1: memref<1x64x256xbf16, #tpu.memory_space<vmem>>, %arg2: memref<3x64x192xbf16, #tpu.memory_space<vmem>>, %arg3: memref<64x1xf32, #tpu.memory_space<vmem>>, %arg4: memref<3x2x192xf32, #tpu.memory_space<vmem>>, %arg5: memref<2x1xf32, #tpu.memory_space<vmem>>, %arg6: memref<1x2x256xf32, #tpu.memory_space<vmem>>) attributes {dimension_semantics = [#tpu.dimension_semantics<parallel>], iteration_bounds = array<i64: 2>, scalar_prefetch = 0 : i64, scratch_operands = 0 : i64, tpu.core_type = #tpu.core_type<tc>, window_params = [{transform_indices = @transform_0, window_bounds = array<i64: 1, 64, 256>}, {pipeline_mode = #tpu.pipeline_mode<synchronous>, transform_indices = @transform_1, window_bounds = array<i64: 3, 64, 192>}, {pipeline_mode = #tpu.pipeline_mode<synchronous>, transform_indices = @transform_2, window_bounds = array<i64: 64, 1>}, {pipeline_mode = #tpu.pipeline_mode<synchronous>, transform_indices = @transform_3, window_bounds = array<i64: 3, 2, 192>}, {pipeline_mode = #tpu.pipeline_mode<synchronous>, transform_indices = @transform_4, window_bounds = array<i64: 2, 1>}, {transform_indices = @transform_5, window_bounds = array<i64: 1, 2, 256>}]} {
    %0 = tpu.iota {dimensions = array<i32: 1>} : vector<1x256xi32>
    %c16_i32 = arith.constant 16 : i32
    %c0_i32 = arith.constant 0 : i32
    %1 = arith.cmpi eq, %c16_i32, %c0_i32 : i32
    %c1_i32 = arith.constant 1 : i32
    %2 = arith.select %1, %c1_i32, %c16_i32 : i32
    %3 = vector.broadcast %2 : i32 to vector<1x256xi32>
    %4 = arith.remsi %0, %3 : vector<1x256xi32>
    %c0_i32_0 = arith.constant 0 : i32
    %5 = vector.broadcast %c0_i32_0 : i32 to vector<1x256xi32>
    %6 = arith.cmpi ne, %4, %5 : vector<1x256xi32>
    %c0_i32_1 = arith.constant 0 : i32
    %7 = vector.broadcast %c0_i32_1 : i32 to vector<1x256xi32>
    %8 = arith.cmpi slt, %4, %7 : vector<1x256xi32>
    %c0_i32_2 = arith.constant 0 : i32
    %9 = arith.cmpi slt, %2, %c0_i32_2 : i32
    %10 = vector.broadcast %9 : i1 to vector<1x256xi1>
    %11 = vector.broadcast %10 : vector<1x256xi1> to vector<1x256xi1>
    %12 = arith.xori %8, %11 : vector<1x256xi1>
    %13 = arith.andi %12, %6 : vector<1x256xi1>
    %14 = vector.broadcast %2 : i32 to vector<1x256xi32>
    %15 = arith.addi %4, %14 : vector<1x256xi32>
    %16 = arith.select %13, %15, %4 : vector<1x256xi1>, vector<1x256xi32>
    %c1_i32_3 = arith.constant 1 : i32
    %17 = vector.broadcast %c1_i32_3 : i32 to vector<1x256xi32>
    %18 = arith.cmpi sge, %16, %17 : vector<1x256xi32>
    %cst = arith.constant 1.000000e+00 : f32
    %cst_4 = arith.constant 0.000000e+00 : f32
    %19 = vector.broadcast %cst : f32 to vector<1x256xf32>
    %20 = vector.broadcast %cst_4 : f32 to vector<1x256xf32>
    %21 = arith.select %18, %19, %20 : vector<1x256xi1>, vector<1x256xf32>
    %c15_i32 = arith.constant 15 : i32
    %22 = vector.broadcast %c15_i32 : i32 to vector<1x256xi32>
    %23 = arith.cmpi slt, %16, %22 : vector<1x256xi32>
    %cst_5 = arith.constant 1.000000e+00 : f32
    %cst_6 = arith.constant 0.000000e+00 : f32
    %24 = vector.broadcast %cst_5 : f32 to vector<1x256xf32>
    %25 = vector.broadcast %cst_6 : f32 to vector<1x256xf32>
    %26 = arith.select %23, %24, %25 : vector<1x256xi1>, vector<1x256xf32>
    %c16_i32_7 = arith.constant 16 : i32
    %27 = vector.broadcast %c16_i32_7 : i32 to vector<1x256xi32>
    %28 = arith.cmpi sge, %0, %27 : vector<1x256xi32>
    %cst_8 = arith.constant 1.000000e+00 : f32
    %cst_9 = arith.constant 0.000000e+00 : f32
    %29 = vector.broadcast %cst_8 : f32 to vector<1x256xf32>
    %30 = vector.broadcast %cst_9 : f32 to vector<1x256xf32>
    %31 = arith.select %28, %29, %30 : vector<1x256xi1>, vector<1x256xf32>
    %c240_i32 = arith.constant 240 : i32
    %32 = vector.broadcast %c240_i32 : i32 to vector<1x256xi32>
    %33 = arith.cmpi slt, %0, %32 : vector<1x256xi32>
    %cst_10 = arith.constant 1.000000e+00 : f32
    %cst_11 = arith.constant 0.000000e+00 : f32
    %34 = vector.broadcast %cst_10 : f32 to vector<1x256xf32>
    %35 = vector.broadcast %cst_11 : f32 to vector<1x256xf32>
    %36 = arith.select %33, %34, %35 : vector<1x256xi1>, vector<1x256xf32>
    %c0 = arith.constant 0 : index
    %c0_12 = arith.constant 0 : index
    %c0_13 = arith.constant 0 : index
    %37 = vector.load %arg1[%c0, %c0_12, %c0_13] : memref<1x64x256xbf16, #tpu.memory_space<vmem>>, vector<1x64x256xbf16>
    %38 = vector.shape_cast %37 : vector<1x64x256xbf16> to vector<64x256xbf16>
    %39 = arith.extf %38 : vector<64x256xbf16> to vector<64x256xf32>
    %c16_i32_14 = arith.constant 16 : i32
    %40 = tpu.dynamic_rotate %39 by %c16_i32_14 dim 1 : vector<64x256xf32>, i32 -> vector<64x256xf32>
    %c1_i32_15 = arith.constant 1 : i32
    %41 = tpu.dynamic_rotate %40 by %c1_i32_15 dim 1 : vector<64x256xf32>, i32 -> vector<64x256xf32>
    %42 = vector.broadcast %21 : vector<1x256xf32> to vector<64x256xf32>
    %43 = arith.mulf %41, %42 : vector<64x256xf32>
    %c255_i32 = arith.constant 255 : i32
    %44 = tpu.dynamic_rotate %40 by %c255_i32 dim 1 : vector<64x256xf32>, i32 -> vector<64x256xf32>
    %45 = vector.broadcast %26 : vector<1x256xf32> to vector<64x256xf32>
    %46 = arith.mulf %44, %45 : vector<64x256xf32>
    %47 = tpu.concatenate %43, %40, %46 in 0 : vector<64x256xf32>, vector<64x256xf32>, vector<64x256xf32> -> vector<192x256xf32>
    %48 = arith.truncf %47 : vector<192x256xf32> to vector<192x256xbf16>
    %c0_16 = arith.constant 0 : index
    %c0_17 = arith.constant 0 : index
    %c0_18 = arith.constant 0 : index
    %49 = vector.load %arg2[%c0_16, %c0_17, %c0_18] : memref<3x64x192xbf16, #tpu.memory_space<vmem>>, vector<1x64x192xbf16>
    %50 = vector.shape_cast %49 : vector<1x64x192xbf16> to vector<64x192xbf16>
    %cst_19 = arith.constant dense<0.000000e+00> : vector<64x256xf32>
    %51 = tpu.matmul %50, %48, %cst_19 {dimension_numbers = #tpu.dot_dimension_numbers<[1], [0], [0], [1], [0, 0, 1, 1], [], []>} : vector<64x192xbf16>, vector<192x256xbf16>, vector<64x256xf32> -> vector<64x256xf32>
    %52 = vector.broadcast %31 : vector<1x256xf32> to vector<64x256xf32>
    %53 = arith.mulf %51, %52 : vector<64x256xf32>
    %c1_i32_20 = arith.constant 1 : i32
    %54 = tpu.dynamic_rotate %39 by %c1_i32_20 dim 1 : vector<64x256xf32>, i32 -> vector<64x256xf32>
    %55 = vector.broadcast %21 : vector<1x256xf32> to vector<64x256xf32>
    %56 = arith.mulf %54, %55 : vector<64x256xf32>
    %c255_i32_21 = arith.constant 255 : i32
    %57 = tpu.dynamic_rotate %39 by %c255_i32_21 dim 1 : vector<64x256xf32>, i32 -> vector<64x256xf32>
    %58 = vector.broadcast %26 : vector<1x256xf32> to vector<64x256xf32>
    %59 = arith.mulf %57, %58 : vector<64x256xf32>
    %60 = tpu.concatenate %56, %39, %59 in 0 : vector<64x256xf32>, vector<64x256xf32>, vector<64x256xf32> -> vector<192x256xf32>
    %61 = arith.truncf %60 : vector<192x256xf32> to vector<192x256xbf16>
    %c1 = arith.constant 1 : index
    %c0_22 = arith.constant 0 : index
    %c0_23 = arith.constant 0 : index
    %62 = vector.load %arg2[%c1, %c0_22, %c0_23] : memref<3x64x192xbf16, #tpu.memory_space<vmem>>, vector<1x64x192xbf16>
    %63 = vector.shape_cast %62 : vector<1x64x192xbf16> to vector<64x192xbf16>
    %cst_24 = arith.constant dense<0.000000e+00> : vector<64x256xf32>
    %64 = tpu.matmul %63, %61, %cst_24 {dimension_numbers = #tpu.dot_dimension_numbers<[1], [0], [0], [1], [0, 0, 1, 1], [], []>} : vector<64x192xbf16>, vector<192x256xbf16>, vector<64x256xf32> -> vector<64x256xf32>
    %65 = arith.addf %53, %64 : vector<64x256xf32>
    %c240_i32_25 = arith.constant 240 : i32
    %66 = tpu.dynamic_rotate %39 by %c240_i32_25 dim 1 : vector<64x256xf32>, i32 -> vector<64x256xf32>
    %c1_i32_26 = arith.constant 1 : i32
    %67 = tpu.dynamic_rotate %66 by %c1_i32_26 dim 1 : vector<64x256xf32>, i32 -> vector<64x256xf32>
    %68 = vector.broadcast %21 : vector<1x256xf32> to vector<64x256xf32>
    %69 = arith.mulf %67, %68 : vector<64x256xf32>
    %c255_i32_27 = arith.constant 255 : i32
    %70 = tpu.dynamic_rotate %66 by %c255_i32_27 dim 1 : vector<64x256xf32>, i32 -> vector<64x256xf32>
    %71 = vector.broadcast %26 : vector<1x256xf32> to vector<64x256xf32>
    %72 = arith.mulf %70, %71 : vector<64x256xf32>
    %73 = tpu.concatenate %69, %66, %72 in 0 : vector<64x256xf32>, vector<64x256xf32>, vector<64x256xf32> -> vector<192x256xf32>
    %74 = arith.truncf %73 : vector<192x256xf32> to vector<192x256xbf16>
    %c2 = arith.constant 2 : index
    %c0_28 = arith.constant 0 : index
    %c0_29 = arith.constant 0 : index
    %75 = vector.load %arg2[%c2, %c0_28, %c0_29] : memref<3x64x192xbf16, #tpu.memory_space<vmem>>, vector<1x64x192xbf16>
    %76 = vector.shape_cast %75 : vector<1x64x192xbf16> to vector<64x192xbf16>
    %cst_30 = arith.constant dense<0.000000e+00> : vector<64x256xf32>
    %77 = tpu.matmul %76, %74, %cst_30 {dimension_numbers = #tpu.dot_dimension_numbers<[1], [0], [0], [1], [0, 0, 1, 1], [], []>} : vector<64x192xbf16>, vector<192x256xbf16>, vector<64x256xf32> -> vector<64x256xf32>
    %78 = vector.broadcast %36 : vector<1x256xf32> to vector<64x256xf32>
    %79 = arith.mulf %77, %78 : vector<64x256xf32>
    %80 = arith.addf %65, %79 : vector<64x256xf32>
    %c0_31 = arith.constant 0 : index
    %c0_32 = arith.constant 0 : index
    %81 = vector.load %arg3[%c0_31, %c0_32] : memref<64x1xf32, #tpu.memory_space<vmem>>, vector<64x1xf32>
    %82 = vector.broadcast %81 : vector<64x1xf32> to vector<64x256xf32>
    %83 = arith.addf %80, %82 : vector<64x256xf32>
    %cst_33 = arith.constant dense<0.000000e+00> : vector<64xf32>
    %84 = vector.multi_reduction <add>, %83, %cst_33 [1] : vector<64x256xf32> to vector<64xf32>
    %85 = vector.shape_cast %84 : vector<64xf32> to vector<64x1xf32>
    %86 = arith.mulf %83, %83 : vector<64x256xf32>
    %cst_34 = arith.constant dense<0.000000e+00> : vector<64xf32>
    %87 = vector.multi_reduction <add>, %86, %cst_34 [1] : vector<64x256xf32> to vector<64xf32>
    %88 = vector.shape_cast %87 : vector<64xf32> to vector<64x1xf32>
    %cst_35 = arith.constant 3.906250e-03 : f32
    %89 = vector.broadcast %cst_35 : f32 to vector<64x1xf32>
    %90 = arith.mulf %85, %89 : vector<64x1xf32>
    %cst_36 = arith.constant 3.906250e-03 : f32
    %91 = vector.broadcast %cst_36 : f32 to vector<64x1xf32>
    %92 = arith.mulf %88, %91 : vector<64x1xf32>
    %93 = arith.mulf %90, %90 : vector<64x1xf32>
    %94 = arith.subf %92, %93 : vector<64x1xf32>
    %95 = vector.broadcast %90 : vector<64x1xf32> to vector<64x256xf32>
    %96 = arith.subf %83, %95 : vector<64x256xf32>
    %cst_37 = arith.constant 9.99999974E-6 : f32
    %97 = vector.broadcast %cst_37 : f32 to vector<64x1xf32>
    %98 = arith.addf %94, %97 : vector<64x1xf32>
    %99 = math.rsqrt %98 : vector<64x1xf32>
    %100 = vector.broadcast %99 : vector<64x1xf32> to vector<64x256xf32>
    %101 = arith.mulf %96, %100 : vector<64x256xf32>
    %cst_38 = arith.constant 0.000000e+00 : f32
    %102 = vector.broadcast %cst_38 : f32 to vector<64x256xf32>
    %103 = arith.maximumf %101, %102 : vector<64x256xf32>
    %c16_i32_39 = arith.constant 16 : i32
    %104 = tpu.dynamic_rotate %103 by %c16_i32_39 dim 1 : vector<64x256xf32>, i32 -> vector<64x256xf32>
    %c1_i32_40 = arith.constant 1 : i32
    %105 = tpu.dynamic_rotate %104 by %c1_i32_40 dim 1 : vector<64x256xf32>, i32 -> vector<64x256xf32>
    %106 = vector.broadcast %21 : vector<1x256xf32> to vector<64x256xf32>
    %107 = arith.mulf %105, %106 : vector<64x256xf32>
    %c255_i32_41 = arith.constant 255 : i32
    %108 = tpu.dynamic_rotate %104 by %c255_i32_41 dim 1 : vector<64x256xf32>, i32 -> vector<64x256xf32>
    %109 = vector.broadcast %26 : vector<1x256xf32> to vector<64x256xf32>
    %110 = arith.mulf %108, %109 : vector<64x256xf32>
    %111 = tpu.concatenate %107, %104, %110 in 0 : vector<64x256xf32>, vector<64x256xf32>, vector<64x256xf32> -> vector<192x256xf32>
    %c0_42 = arith.constant 0 : index
    %c0_43 = arith.constant 0 : index
    %c0_44 = arith.constant 0 : index
    %112 = vector.load %arg4[%c0_42, %c0_43, %c0_44] : memref<3x2x192xf32, #tpu.memory_space<vmem>>, vector<1x2x192xf32>
    %113 = vector.shape_cast %112 : vector<1x2x192xf32> to vector<2x192xf32>
    %cst_45 = arith.constant dense<0.000000e+00> : vector<2x256xf32>
    %114 = tpu.matmul %113, %111, %cst_45 {dimension_numbers = #tpu.dot_dimension_numbers<[1], [0], [0], [1], [0, 0, 1, 1], [], []>} : vector<2x192xf32>, vector<192x256xf32>, vector<2x256xf32> -> vector<2x256xf32>
    %115 = vector.broadcast %31 : vector<1x256xf32> to vector<2x256xf32>
    %116 = arith.mulf %114, %115 : vector<2x256xf32>
    %c1_i32_46 = arith.constant 1 : i32
    %117 = tpu.dynamic_rotate %103 by %c1_i32_46 dim 1 : vector<64x256xf32>, i32 -> vector<64x256xf32>
    %118 = vector.broadcast %21 : vector<1x256xf32> to vector<64x256xf32>
    %119 = arith.mulf %117, %118 : vector<64x256xf32>
    %c255_i32_47 = arith.constant 255 : i32
    %120 = tpu.dynamic_rotate %103 by %c255_i32_47 dim 1 : vector<64x256xf32>, i32 -> vector<64x256xf32>
    %121 = vector.broadcast %26 : vector<1x256xf32> to vector<64x256xf32>
    %122 = arith.mulf %120, %121 : vector<64x256xf32>
    %123 = tpu.concatenate %119, %103, %122 in 0 : vector<64x256xf32>, vector<64x256xf32>, vector<64x256xf32> -> vector<192x256xf32>
    %c1_48 = arith.constant 1 : index
    %c0_49 = arith.constant 0 : index
    %c0_50 = arith.constant 0 : index
    %124 = vector.load %arg4[%c1_48, %c0_49, %c0_50] : memref<3x2x192xf32, #tpu.memory_space<vmem>>, vector<1x2x192xf32>
    %125 = vector.shape_cast %124 : vector<1x2x192xf32> to vector<2x192xf32>
    %cst_51 = arith.constant dense<0.000000e+00> : vector<2x256xf32>
    %126 = tpu.matmul %125, %123, %cst_51 {dimension_numbers = #tpu.dot_dimension_numbers<[1], [0], [0], [1], [0, 0, 1, 1], [], []>} : vector<2x192xf32>, vector<192x256xf32>, vector<2x256xf32> -> vector<2x256xf32>
    %127 = arith.addf %116, %126 : vector<2x256xf32>
    %c240_i32_52 = arith.constant 240 : i32
    %128 = tpu.dynamic_rotate %103 by %c240_i32_52 dim 1 : vector<64x256xf32>, i32 -> vector<64x256xf32>
    %c1_i32_53 = arith.constant 1 : i32
    %129 = tpu.dynamic_rotate %128 by %c1_i32_53 dim 1 : vector<64x256xf32>, i32 -> vector<64x256xf32>
    %130 = vector.broadcast %21 : vector<1x256xf32> to vector<64x256xf32>
    %131 = arith.mulf %129, %130 : vector<64x256xf32>
    %c255_i32_54 = arith.constant 255 : i32
    %132 = tpu.dynamic_rotate %128 by %c255_i32_54 dim 1 : vector<64x256xf32>, i32 -> vector<64x256xf32>
    %133 = vector.broadcast %26 : vector<1x256xf32> to vector<64x256xf32>
    %134 = arith.mulf %132, %133 : vector<64x256xf32>
    %135 = tpu.concatenate %131, %128, %134 in 0 : vector<64x256xf32>, vector<64x256xf32>, vector<64x256xf32> -> vector<192x256xf32>
    %c2_55 = arith.constant 2 : index
    %c0_56 = arith.constant 0 : index
    %c0_57 = arith.constant 0 : index
    %136 = vector.load %arg4[%c2_55, %c0_56, %c0_57] : memref<3x2x192xf32, #tpu.memory_space<vmem>>, vector<1x2x192xf32>
    %137 = vector.shape_cast %136 : vector<1x2x192xf32> to vector<2x192xf32>
    %cst_58 = arith.constant dense<0.000000e+00> : vector<2x256xf32>
    %138 = tpu.matmul %137, %135, %cst_58 {dimension_numbers = #tpu.dot_dimension_numbers<[1], [0], [0], [1], [0, 0, 1, 1], [], []>} : vector<2x192xf32>, vector<192x256xf32>, vector<2x256xf32> -> vector<2x256xf32>
    %139 = vector.broadcast %36 : vector<1x256xf32> to vector<2x256xf32>
    %140 = arith.mulf %138, %139 : vector<2x256xf32>
    %141 = arith.addf %127, %140 : vector<2x256xf32>
    %c0_59 = arith.constant 0 : index
    %c0_60 = arith.constant 0 : index
    %142 = vector.load %arg5[%c0_59, %c0_60] : memref<2x1xf32, #tpu.memory_space<vmem>>, vector<2x1xf32>
    %143 = vector.broadcast %142 : vector<2x1xf32> to vector<2x256xf32>
    %144 = arith.addf %141, %143 : vector<2x256xf32>
    %cst_61 = arith.constant dense<0.000000e+00> : vector<2xf32>
    %145 = vector.multi_reduction <add>, %144, %cst_61 [1] : vector<2x256xf32> to vector<2xf32>
    %146 = vector.shape_cast %145 : vector<2xf32> to vector<2x1xf32>
    %147 = arith.mulf %144, %144 : vector<2x256xf32>
    %cst_62 = arith.constant dense<0.000000e+00> : vector<2xf32>
    %148 = vector.multi_reduction <add>, %147, %cst_62 [1] : vector<2x256xf32> to vector<2xf32>
    %149 = vector.shape_cast %148 : vector<2xf32> to vector<2x1xf32>
    %cst_63 = arith.constant 3.906250e-03 : f32
    %150 = vector.broadcast %cst_63 : f32 to vector<2x1xf32>
    %151 = arith.mulf %146, %150 : vector<2x1xf32>
    %cst_64 = arith.constant 3.906250e-03 : f32
    %152 = vector.broadcast %cst_64 : f32 to vector<2x1xf32>
    %153 = arith.mulf %149, %152 : vector<2x1xf32>
    %154 = arith.mulf %151, %151 : vector<2x1xf32>
    %155 = arith.subf %153, %154 : vector<2x1xf32>
    %156 = vector.broadcast %151 : vector<2x1xf32> to vector<2x256xf32>
    %157 = arith.subf %144, %156 : vector<2x256xf32>
    %cst_65 = arith.constant 9.99999974E-6 : f32
    %158 = vector.broadcast %cst_65 : f32 to vector<2x1xf32>
    %159 = arith.addf %155, %158 : vector<2x1xf32>
    %160 = math.rsqrt %159 : vector<2x1xf32>
    %161 = vector.broadcast %160 : vector<2x1xf32> to vector<2x256xf32>
    %162 = arith.mulf %157, %161 : vector<2x256xf32>
    %cst_66 = arith.constant 0.000000e+00 : f32
    %163 = vector.broadcast %cst_66 : f32 to vector<2x256xf32>
    %164 = arith.maximumf %162, %163 : vector<2x256xf32>
    %c0_67 = arith.constant 0 : index
    %c0_68 = arith.constant 0 : index
    %c0_69 = arith.constant 0 : index
    %165 = vector.load %arg6[%c0_67, %c0_68, %c0_69] : memref<1x2x256xf32, #tpu.memory_space<vmem>>, vector<1x2x256xf32>
    %166 = vector.shape_cast %165 : vector<1x2x256xf32> to vector<2x256xf32>
    %167 = vector.shape_cast %164 : vector<2x256xf32> to vector<1x2x256xf32>
    tpu.vector_store %arg6[%c0_67, %c0_68, %c0_69], %167 {strides = array<i32>} : memref<1x2x256xf32, #tpu.memory_space<vmem>>, vector<1x2x256xf32>,
    return
  }
  func.func @transform_0(%arg0: i32) -> (i32, i32, i32) {
    %c0_i32 = arith.constant 0 : i32
    %c0_i32_0 = arith.constant 0 : i32
    %c0_i32_1 = arith.constant 0 : i32
    return %arg0, %c0_i32, %c0_i32_0 : i32, i32, i32
  }
  func.func @transform_1(%arg0: i32) -> (i32, i32, i32) {
    %c0_i32 = arith.constant 0 : i32
    %c0_i32_0 = arith.constant 0 : i32
    %c0_i32_1 = arith.constant 0 : i32
    %c0_i32_2 = arith.constant 0 : i32
    return %c0_i32, %c0_i32_0, %c0_i32_1 : i32, i32, i32
  }
  func.func @transform_2(%arg0: i32) -> (i32, i32) {
    %c0_i32 = arith.constant 0 : i32
    %c0_i32_0 = arith.constant 0 : i32
    %c0_i32_1 = arith.constant 0 : i32
    return %c0_i32, %c0_i32_0 : i32, i32
  }
  func.func @transform_3(%arg0: i32) -> (i32, i32, i32) {
    %c0_i32 = arith.constant 0 : i32
    %c0_i32_0 = arith.constant 0 : i32
    %c0_i32_1 = arith.constant 0 : i32
    %c0_i32_2 = arith.constant 0 : i32
    return %c0_i32, %c0_i32_0, %c0_i32_1 : i32, i32, i32
  }
  func.func @transform_4(%arg0: i32) -> (i32, i32) {
    %c0_i32 = arith.constant 0 : i32
    %c0_i32_0 = arith.constant 0 : i32
    %c0_i32_1 = arith.constant 0 : i32
    return %c0_i32, %c0_i32_0 : i32, i32
  }
  func.func @transform_5(%arg0: i32) -> (i32, i32, i32) {
    %c0_i32 = arith.constant 0 : i32
    %c0_i32_0 = arith.constant 0 : i32
    %c0_i32_1 = arith.constant 0 : i32
    return %arg0, %c0_i32, %c0_i32_0 : i32, i32, i32
  }
}

</mosaic_0001>

<llo_original>
// kernel: tpu_custom_call.1
$region0: #{tpu_custom_call.1}
  #allocation0 [shape = 'u32[]', space=smem, size = 0x4, offset = 0x4, fixed_abs, tag = 'smem constant byte address 0x4 - core index']
  #allocation1 [shape = 'u32[144,128]{1,0:T(1,128)}', space=vmem, size = 0x12000, scoped, tag = 'internal scratch']
  %s0 = inlined_call_operand.hbm [shape: bf16[2,64,256], index: 0, kind: input, shape index: {}]
  %s1 = inlined_call_operand.hbm [shape: bf16[3,64,192], index: 1, kind: input, shape index: {}]
  %s2 = inlined_call_operand.hbm [shape: f32[64,1], index: 2, kind: input, shape index: {}]
  %s3 = inlined_call_operand.hbm [shape: f32[3,2,192], index: 3, kind: input, shape index: {}]
  %s4 = inlined_call_operand.hbm [shape: f32[2,1], index: 4, kind: input, shape index: {}]
  %s5 = inlined_call_operand.hbm [shape: f32[2,2,256], index: 5, kind: output, shape index: {}]
  %s6 = sld [smem:[#allocation0]]
  $region73: #{tpu_custom_call.1} parent=0
    _
  %s8 = ssub.s32 1, %s6
  %s9 = scalar_select 0, %s8, %s6
  $region1: #{tpu_custom_call.1} parent=0
    #allocation2 [shape = 'u8[65536]{0}', space=vmem, size = 0x10000, scoped, tag = 'input window, operand 0']
    #allocation3 [shape = 's32[2]{0}', space=sflag, size = 0x8, scoped, tag = 'scoped memory for tpu_custom_call.1']
    #allocation4 [shape = 's32[2]{0}', space=sflag, size = 0x8, scoped, tag = 'scoped memory for tpu_custom_call.1']
    #allocation5 [shape = 'u8[98304]{0}', space=vmem, size = 0x18000, scoped, tag = 'input window, operand 1, single buffered']
    #allocation6 [shape = 's32[1]{0}', space=sflag, size = 0x4, scoped, tag = 'scoped memory for tpu_custom_call.1']
    #allocation7 [shape = 'u8[32768]{0}', space=vmem, size = 0x8000, scoped, tag = 'input window, operand 2, single buffered']
    #allocation8 [shape = 'u8[6144]{0}', space=vmem, size = 0x1800, scoped, tag = 'input window, operand 3, single buffered']
    #allocation9 [shape = 's32[1]{0}', space=sflag, size = 0x4, scoped, tag = 'scoped memory for tpu_custom_call.1']
    #allocation10 [shape = 'u8[1024]{0}', space=vmem, size = 0x400, scoped, tag = 'input window, operand 4, single buffered']
    #allocation11 [shape = 'u8[4096]{0}', space=vmem, size = 0x1000, scoped, tag = 'output window, operand 0']
    %10 = vsyncpa [#allocation3], 0
    %s11 = scalar_lea.sflag [#allocation3], 1
    %12 = vsyncpa %s11, 0
    %13 = vsyncpa [#allocation6], 0
    %14 = vsyncpa [#allocation9], 0
    %15 = vsyncpa [#allocation4], 0
    %s16 = scalar_lea.sflag [#allocation4], 1
    %17 = vsyncpa %s16, 0
    loop: start=0, step=1, limit=4
    $region2: #{tpu_custom_call.1} parent=1 // loop_pre_header
      _
    $region3: #{tpu_custom_call.1} parent=1 // loop_header
      %s19 = sphi 0, %s23
      %p20 = scmp.ge.s32.totalorder %s19, 4
      %s29 = sphi 0, %s31
      %s32 = sphi 0, %s29
      %s33 = sphi 0, %s32
      %s49 = sphi 0, %s33
      %s53 = sphi 0, %s53
      %s55 = sphi 0, %s53
      %s56 = sphi 0, %s55
      %s70 = sphi 0, %s56
      %s74 = sphi 0, %s74
      %s76 = sphi 0, %s74
      %s77 = sphi 0, %s76
      %s91 = sphi 0, %s77
      %s95 = sphi 0, %s95
      %s97 = sphi 0, %s95
      %s98 = sphi 0, %s97
      %s112 = sphi 0, %s98
      %s116 = sphi 0, %s116
      %s118 = sphi 0, %s116
      %s119 = sphi 0, %s118
      %s133 = sphi 0, %s119
      %s139 = sphi 0, %s141
      %s142 = sphi 0, %s139
      %s143 = sphi 0, %s142
      %s159 = sphi 0, %s143
    $region4: #{tpu_custom_call.1} parent=1 // loop_header_branch
      %22 = sbr.rel (%p20) target = $region8
    $region5: #{tpu_custom_call.1} parent=1 // loop_body
      %s24 = ssub.s32 %s19, 1
      %s25 = ssub.s32 %s19, 2
      %s26 = sadd.s32 %s19, 1
      %s27 = ssub.s32 %s19, %s26
      %p28 = scmp.eq.s32.totalorder %s27, 0
      %s30 = sadd.s32 %s29, 1
      %s31 = scalar_select %p28, %s29, %s30
      %p34 = pneg %p28
      %p35 = scmp.eq.s32.totalorder %s19, 1
      %p36 = por %p34, %p35
      %p37 = scmp.ne.s32.totalorder %s29, %s32
      %p38 = scmp.eq.s32.totalorder %s19, 0
      %p39 = por %p37, %p38
      %p40 = scmp.ne.s32.totalorder %s29, %s32
      %p41 = scmp.eq.s32.totalorder %s24, 1
      %p42 = por %p40, %p41
      %p43 = scmp.ne.s32.totalorder %s32, %s33
      %p44 = scmp.eq.s32.totalorder %s24, 0
      %p45 = por %p43, %p44
      %p46 = scmp.ne.s32.totalorder %s32, %s33
      %p47 = scmp.eq.s32.totalorder %s25, 1
      %p48 = por %p46, %p47
      %p50 = scmp.ne.s32.totalorder %s33, %s49
      %p51 = scmp.eq.s32.totalorder %s25, 0
      %p52 = por %p50, %p51
      %s54 = sadd.s32 %s53, 1
      %p57 = scmp.eq.s32.totalorder %s19, 1
      %p58 = scmp.ne.s32.totalorder %s53, %s55
      %p59 = scmp.eq.s32.totalorder %s19, 0
      %p60 = por %p58, %p59
      %p61 = scmp.ne.s32.totalorder %s53, %s55
      %p62 = scmp.eq.s32.totalorder %s24, 1
      %p63 = por %p61, %p62
      %p64 = scmp.ne.s32.totalorder %s55, %s56
      %p65 = scmp.eq.s32.totalorder %s24, 0
      %p66 = por %p64, %p65
      %p67 = scmp.ne.s32.totalorder %s55, %s56
      %p68 = scmp.eq.s32.totalorder %s25, 1
      %p69 = por %p67, %p68
      %p71 = scmp.ne.s32.totalorder %s56, %s70
      %p72 = scmp.eq.s32.totalorder %s25, 0
      %p73 = por %p71, %p72
      %s75 = sadd.s32 %s74, 1
      %p78 = scmp.eq.s32.totalorder %s19, 1
      %p79 = scmp.ne.s32.totalorder %s74, %s76
      %p80 = scmp.eq.s32.totalorder %s19, 0
      %p81 = por %p79, %p80
      %p82 = scmp.ne.s32.totalorder %s74, %s76
      %p83 = scmp.eq.s32.totalorder %s24, 1
      %p84 = por %p82, %p83
      %p85 = scmp.ne.s32.totalorder %s76, %s77
      %p86 = scmp.eq.s32.totalorder %s24, 0
      %p87 = por %p85, %p86
      %p88 = scmp.ne.s32.totalorder %s76, %s77
      %p89 = scmp.eq.s32.totalorder %s25, 1
      %p90 = por %p88, %p89
      %p92 = scmp.ne.s32.totalorder %s77, %s91
      %p93 = scmp.eq.s32.totalorder %s25, 0
      %p94 = por %p92, %p93
      %s96 = sadd.s32 %s95, 1
      %p99 = scmp.eq.s32.totalorder %s19, 1
      %p100 = scmp.ne.s32.totalorder %s95, %s97
      %p101 = scmp.eq.s32.totalorder %s19, 0
      %p102 = por %p100, %p101
      %p103 = scmp.ne.s32.totalorder %s95, %s97
      %p104 = scmp.eq.s32.totalorder %s24, 1
      %p105 = por %p103, %p104
      %p106 = scmp.ne.s32.totalorder %s97, %s98
      %p107 = scmp.eq.s32.totalorder %s24, 0
      %p108 = por %p106, %p107
      %p109 = scmp.ne.s32.totalorder %s97, %s98
      %p110 = scmp.eq.s32.totalorder %s25, 1
      %p111 = por %p109, %p110
      %p113 = scmp.ne.s32.totalorder %s98, %s112
      %p114 = scmp.eq.s32.totalorder %s25, 0
      %p115 = por %p113, %p114
      %s117 = sadd.s32 %s116, 1
      %p120 = scmp.eq.s32.totalorder %s19, 1
      %p121 = scmp.ne.s32.totalorder %s116, %s118
      %p122 = scmp.eq.s32.totalorder %s19, 0
      %p123 = por %p121, %p122
      %p124 = scmp.ne.s32.totalorder %s116, %s118
      %p125 = scmp.eq.s32.totalorder %s24, 1
      %p126 = por %p124, %p125
      %p127 = scmp.ne.s32.totalorder %s118, %s119
      %p128 = scmp.eq.s32.totalorder %s24, 0
      %p129 = por %p127, %p128
      %p130 = scmp.ne.s32.totalorder %s118, %s119
      %p131 = scmp.eq.s32.totalorder %s25, 1
      %p132 = por %p130, %p131
      %p134 = scmp.ne.s32.totalorder %s119, %s133
      %p135 = scmp.eq.s32.totalorder %s25, 0
      %p136 = por %p134, %p135
      %s137 = ssub.s32 %s19, %s26
      %p138 = scmp.eq.s32.totalorder %s137, 0
      %s140 = sadd.s32 %s139, 1
      %s141 = scalar_select %p138, %s139, %s140
      %p144 = pneg %p138
      %p145 = scmp.eq.s32.totalorder %s19, 1
      %p146 = por %p144, %p145
      %p147 = scmp.ne.s32.totalorder %s139, %s142
      %p148 = scmp.eq.s32.totalorder %s19, 0
      %p149 = por %p147, %p148
      %p150 = scmp.ne.s32.totalorder %s139, %s142
      %p151 = scmp.eq.s32.totalorder %s24, 1
      %p152 = por %p150, %p151
      %p153 = scmp.ne.s32.totalorder %s142, %s143
      %p154 = scmp.eq.s32.totalorder %s24, 0
      %p155 = por %p153, %p154
      %p156 = scmp.ne.s32.totalorder %s142, %s143
      %p157 = scmp.eq.s32.totalorder %s25, 1
      %p158 = por %p156, %p157
      %p160 = scmp.ne.s32.totalorder %s143, %s159
      %p161 = scmp.eq.s32.totalorder %s25, 0
      %p162 = por %p160, %p161
      %p163 = scmp.le.s32.totalorder 1, %s19
      %p164 = scmp.lt.s32.totalorder %s19, 3
      %p165 = pnand %p163, %p164
      %p166 = pneg %p165
      // Predicated region
      $region9: #{tpu_custom_call.1} parent=5 // pred_check
        _
      $region10: #{tpu_custom_call.1} parent=5 // pred_check_branch
        %168 = sbr.rel (%p165) target = $region12
      $region11: #{tpu_custom_call.1} parent=5 // pred_region
        %s169 = ssub.s32 %s19, 1
        // Predicated region
        $region13: #{tpu_custom_call.1} parent=11 // pred_check
          %p170 = pneg %p66
        $region14: #{tpu_custom_call.1} parent=11 // pred_check_branch
          %172 = sbr.rel (%p170) target = $region16
        $region15: #{tpu_custom_call.1} parent=11 // pred_region
          %s174 = ssub.s32 3072, 3072
          %175 = vsyncadd [#allocation6], %s174
          %s176 = sshll.u32 [#allocation5], 4
          %s177 = int_to_ptr.vmem [resolvable:$true] %s176
          %182 = dma.hbm_to_vmem [thread:$0]  %s1, 3072, %s177, [#allocation6], 128, 128, 8
        $region16: #{tpu_custom_call.1} parent=11 // pred_fallthru
          _
        // Predicated region
        $region17: #{tpu_custom_call.1} parent=11 // pred_check
          %p183 = pneg %p87
        $region18: #{tpu_custom_call.1} parent=11 // pred_check_branch
          %185 = sbr.rel (%p183) target = $region20
        $region19: #{tpu_custom_call.1} parent=11 // pred_region
          %s187 = ssub.s32 1024, 1024
          %188 = vsyncadd [#allocation6], %s187
          %s189 = sshll.u32 [#allocation7], 4
          %s190 = int_to_ptr.vmem [resolvable:$true] %s189
          %195 = dma.hbm_to_vmem [thread:$0]  %s2, 1024, %s190, [#allocation6], 128, 128, 8
        $region20: #{tpu_custom_call.1} parent=11 // pred_fallthru
          _
        // Predicated region
        $region21: #{tpu_custom_call.1} parent=11 // pred_check
          %p196 = pneg %p108
        $region22: #{tpu_custom_call.1} parent=11 // pred_check_branch
          %198 = sbr.rel (%p196) target = $region24
        $region23: #{tpu_custom_call.1} parent=11 // pred_region
          %s200 = ssub.s32 192, 192
          %201 = vsyncadd [#allocation9], %s200
          %s202 = sshll.u32 [#allocation8], 4
          %s203 = int_to_ptr.vmem [resolvable:$true] %s202
          %208 = dma.hbm_to_vmem [thread:$0]  %s3, 192, %s203, [#allocation9], 64, 64, 4
        $region24: #{tpu_custom_call.1} parent=11 // pred_fallthru
          _
        // Predicated region
        $region25: #{tpu_custom_call.1} parent=11 // pred_check
          %p209 = pneg %p129
        $region26: #{tpu_custom_call.1} parent=11 // pred_check_branch
          %211 = sbr.rel (%p209) target = $region28
        $region27: #{tpu_custom_call.1} parent=11 // pred_region
          %s213 = ssub.s32 32, 32
          %214 = vsyncadd [#allocation9], %s213
          %s216 = sshll.u32 [#allocation10], 4
          %s217 = int_to_ptr.vmem [resolvable:$true] %s216
          %219 = dma.hbm_to_vmem [thread:$0]  %s4, 32, %s217, [#allocation9]
        $region28: #{tpu_custom_call.1} parent=11 // pred_fallthru
          _
      $region12: #{tpu_custom_call.1} parent=5 // pred_fallthru
        _
      %p220 = scmp.lt.s32.totalorder %s19, 2
      // Predicated region
      $region29: #{tpu_custom_call.1} parent=5 // pred_check
        %p221 = pneg %p220
      $region30: #{tpu_custom_call.1} parent=5 // pred_check_branch
        %223 = sbr.rel (%p221) target = $region32
      $region31: #{tpu_custom_call.1} parent=5 // pred_region
        // Predicated region
        $region33: #{tpu_custom_call.1} parent=31 // pred_check
          %p224 = pneg %p39
        $region34: #{tpu_custom_call.1} parent=31 // pred_check_branch
          %226 = sbr.rel (%p224) target = $region36
        $region35: #{tpu_custom_call.1} parent=31 // pred_region
          %s227 = sand.u32 %s29, 1
          %s228 = scalar_lea.sflag [#allocation3], %s227
          %s229 = sand.u32 %s29, 1
          %s230 = smul.addr %s229, 64
          %s231 = scalar_lea.vmem [#allocation2], %s230
          %s233 = ssub.s32 1024, 1024
          %234 = vsyncadd %s228, %s233
          %s235 = smul.addr %s19, 16
          %s236 = smul.addr %s235, 64
          %s237 = scalar_lea.hbm %s0, %s236
          %s238 = sshll.u32 %s231, 4
          %s239 = int_to_ptr.vmem [resolvable:$true] %s238
          %244 = dma.hbm_to_vmem [thread:$0]  %s237, 1024, %s239, %s228, 128, 128, 8
        $region36: #{tpu_custom_call.1} parent=31 // pred_fallthru
          _
      $region32: #{tpu_custom_call.1} parent=5 // pred_fallthru
        _
      %p245 = scmp.le.s32.totalorder 1, %s19
      %p246 = scmp.lt.s32.totalorder %s19, 3
      %p247 = pnand %p245, %p246
      %p248 = pneg %p247
      // Predicated region
      $region37: #{tpu_custom_call.1} parent=5 // pred_check
        _
      $region38: #{tpu_custom_call.1} parent=5 // pred_check_branch
        %250 = sbr.rel (%p247) target = $region40
      $region39: #{tpu_custom_call.1} parent=5 // pred_region
        %s251 = ssub.s32 %s19, 1
        %s252 = sand.u32 %s32, 1
        %s253 = scalar_lea.sflag [#allocation3], %s252
        %s254 = sand.u32 %s32, 1
        %s255 = smul.addr %s254, 64
        %s256 = scalar_lea.vmem [#allocation2], %s255
        // Predicated region
        $region41: #{tpu_custom_call.1} parent=39 // pred_check
          %p257 = pneg %p45
        $region42: #{tpu_custom_call.1} parent=39 // pred_check_branch
          %259 = sbr.rel (%p257) target = $region44
        $region43: #{tpu_custom_call.1} parent=39 // pred_region
          %260 = dma.done %s253, 1024
        $region44: #{tpu_custom_call.1} parent=39 // pred_fallthru
          _
        // Predicated region
        $region45: #{tpu_custom_call.1} parent=39 // pred_check
          %p261 = pneg %p66
        $region46: #{tpu_custom_call.1} parent=39 // pred_check_branch
          %263 = sbr.rel (%p261) target = $region48
        $region47: #{tpu_custom_call.1} parent=39 // pred_region
          %264 = dma.done [#allocation6], 3072
        $region48: #{tpu_custom_call.1} parent=39 // pred_fallthru
          _
        // Predicated region
        $region49: #{tpu_custom_call.1} parent=39 // pred_check
          %p265 = pneg %p87
        $region50: #{tpu_custom_call.1} parent=39 // pred_check_branch
          %267 = sbr.rel (%p265) target = $region52
        $region51: #{tpu_custom_call.1} parent=39 // pred_region
          %268 = dma.done [#allocation6], 1024
        $region52: #{tpu_custom_call.1} parent=39 // pred_fallthru
          _
        // Predicated region
        $region53: #{tpu_custom_call.1} parent=39 // pred_check
          %p269 = pneg %p108
        $region54: #{tpu_custom_call.1} parent=39 // pred_check_branch
          %271 = sbr.rel (%p269) target = $region56
        $region55: #{tpu_custom_call.1} parent=39 // pred_region
          %272 = dma.done [#allocation9], 192
        $region56: #{tpu_custom_call.1} parent=39 // pred_fallthru
          _
        // Predicated region
        $region57: #{tpu_custom_call.1} parent=39 // pred_check
          %p273 = pneg %p129
        $region58: #{tpu_custom_call.1} parent=39 // pred_check_branch
          %275 = sbr.rel (%p273) target = $region60
        $region59: #{tpu_custom_call.1} parent=39 // pred_region
          %276 = dma.done [#allocation9], 32
        $region60: #{tpu_custom_call.1} parent=39 // pred_fallthru
          _
        %s277 = sand.u32 %s32, 1
        %s278 = scalar_lea.sflag [#allocation3], %s277
        %s279 = sand.u32 %s32, 1
        %s280 = smul.addr %s279, 64
        %s281 = scalar_lea.vmem [#allocation2], %s280
        %p282 = pneg %p45
        %p283 = pneg %p42
        %p284 = pneg %p66
        %p285 = pneg %p63
        %p286 = pneg %p87
        %p287 = pneg %p84
        %p288 = pneg %p108
        %p289 = pneg %p105
        %p290 = pneg %p129
        %p291 = pneg %p126
        %p292 = pneg %p155
        %p293 = pneg %p152
        %s294 = sand.u32 %s142, 1
        %s295 = scalar_lea.sflag [#allocation4], %s294
        %s296 = sand.u32 %s142, 1
        %s297 = smul.addr %s296, 4
        %s298 = scalar_lea.vmem [#allocation11], %s297
        %v300 = vlaneseq
        %v301 = vand.u32 %v300, 127
        %v302 = vadd.s32 %v301, 128
        %vm303 = vcmp.lt.s32.totalorder %v301, 0
        %v304 = vsub.s32 0, %v301
        %v305 = vsel %vm303, %v304, %v301
        %v306 = vshrl.u32 %v305, 4
        %v307 = vand.u32 %v305, 15
        %v308 = vsub.s32 0, %v307
        %v309 = vsel %vm303, %v308, %v307
        %vm310 = vcmp.lt.s32.totalorder %v302, 0
        %v311 = vsub.s32 0, %v302
        %v312 = vsel %vm310, %v311, %v302
        %v313 = vshrl.u32 %v312, 4
        %v314 = vand.u32 %v312, 15
        %v315 = vsub.s32 0, %v314
        %v316 = vsel %vm310, %v315, %v314
        %vm317 = vcmp.ne.s32.totalorder %v309, 0
        %vm318 = vcmp.ne.s32.totalorder %v316, 0
        %vm319 = vcmp.lt.s32.totalorder %v309, 0
        %vm320 = vcmp.lt.s32.totalorder %v316, 0
        %vm321 = vmand %vm319, %vm317
        %vm322 = vmand %vm320, %vm318
        %v323 = vadd.s32 %v309, 16
        %v324 = vadd.s32 %v316, 16
        %v325 = vsel %vm321, %v323, %v309
        %v326 = vsel %vm322, %v324, %v316
        %vm327 = vcmp.ge.s32.totalorder %v325, 1
        %vm328 = vcmp.ge.s32.totalorder %v326, 1
        %v329 = vsel %vm327, 1.0, 0.0
        %v330 = vsel %vm328, 1.0, 0.0
        %vm331 = vcmp.lt.s32.totalorder %v325, 15
        %vm332 = vcmp.lt.s32.totalorder %v326, 15
        %v333 = vsel %vm331, 1.0, 0.0
        %v334 = vsel %vm332, 1.0, 0.0
        %vm335 = vcmp.ge.s32.totalorder %v301, 16
        %vm336 = vcmp.ge.s32.totalorder %v302, 16
        %v337 = vsel %vm335, 1.0, 0.0
        %v338 = vsel %vm336, 1.0, 0.0
        %vm339 = vcmp.lt.s32.totalorder %v301, 240
        %vm340 = vcmp.lt.s32.totalorder %v302, 240
        %v341 = vsel %vm339, 1.0, 0.0
        %v342 = vsel %vm340, 1.0, 0.0
        %v343 = vld [vmem:[%s256] sm:$0xff]
        %v344 = vld [vmem:[%s256 + $0x8] sm:$0xff]
        %v345 = vld [vmem:[%s256 + $0x10] sm:$0xff]
        %v346 = vld [vmem:[%s256 + $0x18] sm:$0xff]
        %v347 = vld [vmem:[%s256 + $0x20] sm:$0xff]
        %v348 = vld [vmem:[%s256 + $0x28] sm:$0xff]
        %v349 = vld [vmem:[%s256 + $0x30] sm:$0xff]
        %v350 = vld [vmem:[%s256 + $0x38] sm:$0xff]
        %v351 = vunpack.c.l.bf16 %v343
        %v352 = vunpack.c.h.bf16 %v343
        %v353 = vunpack.c.l.bf16 %v344
        %v354 = vunpack.c.h.bf16 %v344
        %v355 = vunpack.c.l.bf16 %v345
        %v356 = vunpack.c.h.bf16 %v345
        %v357 = vunpack.c.l.bf16 %v346
        %v358 = vunpack.c.h.bf16 %v346
        %v359 = vunpack.c.l.bf16 %v347
        %v360 = vunpack.c.h.bf16 %v347
        %v361 = vunpack.c.l.bf16 %v348
        %v362 = vunpack.c.h.bf16 %v348
        %v363 = vunpack.c.l.bf16 %v349
        %v364 = vunpack.c.h.bf16 %v349
        %v365 = vunpack.c.l.bf16 %v350
        %v366 = vunpack.c.h.bf16 %v350
        %367 = vrot.lane.b32.xlu0 %v351, 16
        %v368 = vpop.permute.xlu0 %367
        %369 = vrot.lane.b32.xlu0 %v353, 16
        %v370 = vpop.permute.xlu0 %369
        %371 = vrot.lane.b32.xlu0 %v355, 16
        %v372 = vpop.permute.xlu0 %371
        %373 = vrot.lane.b32.xlu0 %v357, 16
        %v374 = vpop.permute.xlu0 %373
        %375 = vrot.lane.b32.xlu0 %v359, 16
        %v376 = vpop.permute.xlu0 %375
        %377 = vrot.lane.b32.xlu0 %v361, 16
        %v378 = vpop.permute.xlu0 %377
        %379 = vrot.lane.b32.xlu0 %v363, 16
        %v380 = vpop.permute.xlu0 %379
        %381 = vrot.lane.b32.xlu0 %v365, 16
        %v382 = vpop.permute.xlu0 %381
        %383 = vrot.lane.b32.xlu0 %v352, 16
        %v384 = vpop.permute.xlu0 %383
        %385 = vrot.lane.b32.xlu0 %v354, 16
        %v386 = vpop.permute.xlu0 %385
        %387 = vrot.lane.b32.xlu0 %v356, 16
        %v388 = vpop.permute.xlu0 %387
        %389 = vrot.lane.b32.xlu0 %v358, 16
        %v390 = vpop.permute.xlu0 %389
        %391 = vrot.lane.b32.xlu0 %v360, 16
        %v392 = vpop.permute.xlu0 %391
        %393 = vrot.lane.b32.xlu0 %v362, 16
        %v394 = vpop.permute.xlu0 %393
        %395 = vrot.lane.b32.xlu0 %v364, 16
        %v396 = vpop.permute.xlu0 %395
        %397 = vrot.lane.b32.xlu0 %v366, 16
        %v398 = vpop.permute.xlu0 %397
        %vm399 = vcmp.lt.s32.totalorder %v301, 16
        %v400 = vsel %vm399, %v368, %v384
        %v401 = vsel %vm399, %v370, %v386
        %v402 = vsel %vm399, %v372, %v388
        %v403 = vsel %vm399, %v374, %v390
        %v404 = vsel %vm399, %v376, %v392
        %v405 = vsel %vm399, %v378, %v394
        %v406 = vsel %vm399, %v380, %v396
        %v407 = vsel %vm399, %v382, %v398
        %v408 = vsel %vm399, %v384, %v368
        %v409 = vsel %vm399, %v386, %v370
        %v410 = vsel %vm399, %v388, %v372
        %v411 = vsel %vm399, %v390, %v374
        %v412 = vsel %vm399, %v392, %v376
        %v413 = vsel %vm399, %v394, %v378
        %v414 = vsel %vm399, %v396, %v380
        %v415 = vsel %vm399, %v398, %v382
        %416 = vrot.lane.b32.xlu0 %v408, 1
        %v417 = vpop.permute.xlu0 %416
        %418 = vrot.lane.b32.xlu0 %v409, 1
        %v419 = vpop.permute.xlu0 %418
        %420 = vrot.lane.b32.xlu0 %v410, 1
        %v421 = vpop.permute.xlu0 %420
        %422 = vrot.lane.b32.xlu0 %v411, 1
        %v423 = vpop.permute.xlu0 %422
        %424 = vrot.lane.b32.xlu0 %v412, 1
        %v425 = vpop.permute.xlu0 %424
        %426 = vrot.lane.b32.xlu0 %v413, 1
        %v427 = vpop.permute.xlu0 %426
        %428 = vrot.lane.b32.xlu0 %v414, 1
        %v429 = vpop.permute.xlu0 %428
        %430 = vrot.lane.b32.xlu0 %v415, 1
        %v431 = vpop.permute.xlu0 %430
        %432 = vrot.lane.b32.xlu0 %v400, 1
        %v433 = vpop.permute.xlu0 %432
        %434 = vrot.lane.b32.xlu0 %v401, 1
        %v435 = vpop.permute.xlu0 %434
        %436 = vrot.lane.b32.xlu0 %v402, 1
        %v437 = vpop.permute.xlu0 %436
        %438 = vrot.lane.b32.xlu0 %v403, 1
        %v439 = vpop.permute.xlu0 %438
        %440 = vrot.lane.b32.xlu0 %v404, 1
        %v441 = vpop.permute.xlu0 %440
        %442 = vrot.lane.b32.xlu0 %v405, 1
        %v443 = vpop.permute.xlu0 %442
        %444 = vrot.lane.b32.xlu0 %v406, 1
        %v445 = vpop.permute.xlu0 %444
        %446 = vrot.lane.b32.xlu0 %v407, 1
        %v447 = vpop.permute.xlu0 %446
        %vm448 = vcmp.lt.s32.totalorder %v301, 1
        %v449 = vsel %vm448, %v417, %v433
        %v450 = vsel %vm448, %v419, %v435
        %v451 = vsel %vm448, %v421, %v437
        %v452 = vsel %vm448, %v423, %v439
        %v453 = vsel %vm448, %v425, %v441
        %v454 = vsel %vm448, %v427, %v443
        %v455 = vsel %vm448, %v429, %v445
        %v456 = vsel %vm448, %v431, %v447
        %v457 = vsel %vm448, %v433, %v417
        %v458 = vsel %vm448, %v435, %v419
        %v459 = vsel %vm448, %v437, %v421
        %v460 = vsel %vm448, %v439, %v423
        %v461 = vsel %vm448, %v441, %v425
        %v462 = vsel %vm448, %v443, %v427
        %v463 = vsel %vm448, %v445, %v429
        %v464 = vsel %vm448, %v447, %v431
        %v465 = vmul.f32 %v457, %v329
        %v466 = vmul.f32 %v449, %v330
        %v467 = vmul.f32 %v458, %v329
        %v468 = vmul.f32 %v450, %v330
        %v469 = vmul.f32 %v459, %v329
        %v470 = vmul.f32 %v451, %v330
        %v471 = vmul.f32 %v460, %v329
        %v472 = vmul.f32 %v452, %v330
        %v473 = vmul.f32 %v461, %v329
        %v474 = vmul.f32 %v453, %v330
        %v475 = vmul.f32 %v462, %v329
        %v476 = vmul.f32 %v454, %v330
        %v477 = vmul.f32 %v463, %v329
        %v478 = vmul.f32 %v455, %v330
        %v479 = vmul.f32 %v464, %v329
        %v480 = vmul.f32 %v456, %v330
        %481 = vrot.lane.b32.xlu0 %v408, 127
        %v482 = vpop.permute.xlu0 %481
        %483 = vrot.lane.b32.xlu0 %v409, 127
        %v484 = vpop.permute.xlu0 %483
        %485 = vrot.lane.b32.xlu0 %v410, 127
        %v486 = vpop.permute.xlu0 %485
        %487 = vrot.lane.b32.xlu0 %v411, 127
        %v488 = vpop.permute.xlu0 %487
        %489 = vrot.lane.b32.xlu0 %v412, 127
        %v490 = vpop.permute.xlu0 %489
        %491 = vrot.lane.b32.xlu0 %v413, 127
        %v492 = vpop.permute.xlu0 %491
        %493 = vrot.lane.b32.xlu0 %v414, 127
        %v494 = vpop.permute.xlu0 %493
        %495 = vrot.lane.b32.xlu0 %v415, 127
        %v496 = vpop.permute.xlu0 %495
        %497 = vrot.lane.b32.xlu0 %v400, 127
        %v498 = vpop.permute.xlu0 %497
        %499 = vrot.lane.b32.xlu0 %v401, 127
        %v500 = vpop.permute.xlu0 %499
        %501 = vrot.lane.b32.xlu0 %v402, 127
        %v502 = vpop.permute.xlu0 %501
        %503 = vrot.lane.b32.xlu0 %v403, 127
        %v504 = vpop.permute.xlu0 %503
        %505 = vrot.lane.b32.xlu0 %v404, 127
        %v506 = vpop.permute.xlu0 %505
        %507 = vrot.lane.b32.xlu0 %v405, 127
        %v508 = vpop.permute.xlu0 %507
        %509 = vrot.lane.b32.xlu0 %v406, 127
        %v510 = vpop.permute.xlu0 %509
        %511 = vrot.lane.b32.xlu0 %v407, 127
        %v512 = vpop.permute.xlu0 %511
        %vm513 = vcmp.lt.s32.totalorder %v301, 127
        %v514 = vsel %vm513, %v482, %v498
        %v515 = vsel %vm513, %v484, %v500
        %v516 = vsel %vm513, %v486, %v502
        %v517 = vsel %vm513, %v488, %v504
        %v518 = vsel %vm513, %v490, %v506
        %v519 = vsel %vm513, %v492, %v508
        %v520 = vsel %vm513, %v494, %v510
        %v521 = vsel %vm513, %v496, %v512
        %v522 = vsel %vm513, %v498, %v482
        %v523 = vsel %vm513, %v500, %v484
        %v524 = vsel %vm513, %v502, %v486
        %v525 = vsel %vm513, %v504, %v488
        %v526 = vsel %vm513, %v506, %v490
        %v527 = vsel %vm513, %v508, %v492
        %v528 = vsel %vm513, %v510, %v494
        %v529 = vsel %vm513, %v512, %v496
        %v530 = vmul.f32 %v514, %v333
        %v531 = vmul.f32 %v522, %v334
        %v532 = vmul.f32 %v515, %v333
        %v533 = vmul.f32 %v523, %v334
        %v534 = vmul.f32 %v516, %v333
        %v535 = vmul.f32 %v524, %v334
        %v536 = vmul.f32 %v517, %v333
        %v537 = vmul.f32 %v525, %v334
        %v538 = vmul.f32 %v518, %v333
        %v539 = vmul.f32 %v526, %v334
        %v540 = vmul.f32 %v519, %v333
        %v541 = vmul.f32 %v527, %v334
        %v542 = vmul.f32 %v520, %v333
        %v543 = vmul.f32 %v528, %v334
        %v544 = vmul.f32 %v521, %v333
        %v545 = vmul.f32 %v529, %v334
        %v546 = vpack.c.bf16 %v467, %v465
        %v547 = vpack.c.bf16 %v468, %v466
        %v548 = vpack.c.bf16 %v471, %v469
        %v549 = vpack.c.bf16 %v472, %v470
        %v550 = vpack.c.bf16 %v475, %v473
        %v551 = vpack.c.bf16 %v476, %v474
        %v552 = vpack.c.bf16 %v479, %v477
        %v553 = vpack.c.bf16 %v480, %v478
        %v554 = vpack.c.bf16 %v409, %v408
        %v555 = vpack.c.bf16 %v401, %v400
        %v556 = vpack.c.bf16 %v411, %v410
        %v557 = vpack.c.bf16 %v403, %v402
        %v558 = vpack.c.bf16 %v413, %v412
        %v559 = vpack.c.bf16 %v405, %v404
        %v560 = vpack.c.bf16 %v415, %v414
        %v561 = vpack.c.bf16 %v407, %v406
        %v562 = vpack.c.bf16 %v532, %v530
        %v563 = vpack.c.bf16 %v533, %v531
        %v564 = vpack.c.bf16 %v536, %v534
        %v565 = vpack.c.bf16 %v537, %v535
        %v566 = vpack.c.bf16 %v540, %v538
        %v567 = vpack.c.bf16 %v541, %v539
        %v568 = vpack.c.bf16 %v544, %v542
        %v569 = vpack.c.bf16 %v545, %v543
        %v570 = vld [vmem:[#allocation5] sm:$0xff]
        %v571 = vld [vmem:[#allocation5 + $0x8] sm:$0xff]
        %v572 = vld [vmem:[#allocation5 + $0x10] sm:$0xff]
        %v573 = vld [vmem:[#allocation5 + $0x18] sm:$0xff]
        %v574 = vld [vmem:[#allocation5 + $0x20] sm:$0xff]
        %v575 = vld [vmem:[#allocation5 + $0x28] sm:$0xff]
        %v576 = vld [vmem:[#allocation5 + $0x30] sm:$0xff]
        %v577 = vld [vmem:[#allocation5 + $0x38] sm:$0xff]
        %v586 = vunpack.c.l.b16 %v570
        %v587 = vunpack.c.h.b16 %v570
        %v588 = vunpack.c.l.b16 %v571
        %v589 = vunpack.c.h.b16 %v571
        %v590 = vunpack.c.l.b16 %v572
        %v591 = vunpack.c.h.b16 %v572
        %v592 = vunpack.c.l.b16 %v573
        %v593 = vunpack.c.h.b16 %v573
        %v594 = vunpack.c.l.b16 %v574
        %v595 = vunpack.c.h.b16 %v574
        %v596 = vunpack.c.l.b16 %v575
        %v597 = vunpack.c.h.b16 %v575
        %v598 = vunpack.c.l.b16 %v576
        %v599 = vunpack.c.h.b16 %v576
        %v600 = vunpack.c.l.b16 %v577
        %v601 = vunpack.c.h.b16 %v577
        %v602 = vpack.c.b16 %v588, %v586
        %v603 = vpack.c.b16 %v589, %v587
        %v604 = vpack.c.b16 %v592, %v590
        %v605 = vpack.c.b16 %v593, %v591
        %v606 = vpack.c.b16 %v596, %v594
        %v607 = vpack.c.b16 %v597, %v595
        %v608 = vpack.c.b16 %v600, %v598
        %v609 = vpack.c.b16 %v601, %v599
        %vm614 = vcmask 523264
        %v616 = vsel %vm614, %v603, 0
        %v619 = vsel %vm614, %v605, 0
        %v622 = vsel %vm614, %v607, 0
        %v625 = vsel %vm614, %v609, 0
        %627 = vmatprep.subr.bf16.mxu0 %v547
        %628 = vmatpush1.bf16.msra.mxu0 %v546
        %629 = vmatprep.subr.bf16.mxu0 %v549
        %630 = vmatpush1.bf16.msra.mxu0 %v548
        %631 = vmatprep.subr.bf16.mxu0 %v551
        %632 = vmatpush1.bf16.msra.mxu0 %v550
        %633 = vmatprep.subr.bf16.mxu0 %v553
        %634 = vmatpush1.bf16.msra.mxu0 %v552
        %635 = vmatprep.subr.bf16.mxu0 %v555
        %636 = vmatpush1.bf16.msra.mxu0 %v554
        %637 = vmatprep.subr.bf16.mxu0 %v557
        %638 = vmatpush1.bf16.msra.mxu0 %v556
        %639 = vmatprep.subr.bf16.mxu0 %v559
        %640 = vmatpush1.bf16.msra.mxu0 %v558
        %641 = vmatprep.subr.bf16.mxu0 %v561
        %642 = vmatpush1.bf16.msra.mxu0 %v560
        %643 = vmatprep.subr.bf16.mxu0 %v563
        %644 = vmatpush1.bf16.msra.mxu0 %v562
        %645 = vmatprep.subr.bf16.mxu0 %v565
        %646 = vmatpush1.bf16.msra.mxu0 %v564
        %647 = vmatprep.subr.bf16.mxu0 %v567
        %648 = vmatpush1.bf16.msra.mxu0 %v566
        %649 = vmatprep.subr.bf16.mxu0 %v569
        %650 = vmatpush1.bf16.msra.mxu0 %v568
        %651 = vmatprep.subr.bf16.mxu0 0
        %652 = vmatpush1.bf16.msra.mxu0 0
        %653 = vmatprep.subr.bf16.mxu0 0
        %654 = vmatpush1.bf16.msra.mxu0 0
        %655 = vmatprep.subr.bf16.mxu0 0
        %656 = vmatpush1.bf16.msra.mxu0 0
        %657 = vmatprep.subr.bf16.mxu0 0
        %658 = vmatpush1.bf16.msra.mxu0 0
        %659 = vmatprep.mubr.bf16.mxu0 %v616
        %660 = vmatmul.mubr.bf16.gmra.mrb[0].mxu0 %v602
        %v661 = vpop.f32.mrb[0].mxu0
        %v662 = vadd.f32 0.0, %v661
        %v663 = vpop.f32.mrb[0].mxu0
        %v664 = vadd.f32 0.0, %v663
        %v665 = vpop.f32.mrb[0].mxu0
        %v666 = vadd.f32 0.0, %v665
        %v667 = vpop.f32.mrb[0].mxu0
        %v668 = vadd.f32 0.0, %v667
        %669 = vmatprep.mubr.bf16.mxu0 %v619
        %670 = vmatmul.mubr.bf16.gmra.mrb[0].mxu0 %v604
        %v671 = vpop.f32.mrb[0].mxu0
        %v672 = vadd.f32 0.0, %v671
        %v673 = vpop.f32.mrb[0].mxu0
        %v674 = vadd.f32 0.0, %v673
        %v675 = vpop.f32.mrb[0].mxu0
        %v676 = vadd.f32 0.0, %v675
        %v677 = vpop.f32.mrb[0].mxu0
        %v678 = vadd.f32 0.0, %v677
        %679 = vmatprep.mubr.bf16.mxu0 %v622
        %680 = vmatmul.mubr.bf16.gmra.mrb[0].mxu0 %v606
        %v681 = vpop.f32.mrb[0].mxu0
        %v682 = vadd.f32 0.0, %v681
        %v683 = vpop.f32.mrb[0].mxu0
        %v684 = vadd.f32 0.0, %v683
        %v685 = vpop.f32.mrb[0].mxu0
        %v686 = vadd.f32 0.0, %v685
        %v687 = vpop.f32.mrb[0].mxu0
        %v688 = vadd.f32 0.0, %v687
        %689 = vmatprep.mubr.bf16.mxu0 %v625
        %690 = vmatmul.mubr.bf16.gmra.mrb[0].mxu0 %v608
        %v691 = vpop.f32.mrb[0].mxu0
        %v692 = vadd.f32 0.0, %v691
        %v693 = vpop.f32.mrb[0].mxu0
        %v694 = vadd.f32 0.0, %v693
        %v695 = vpop.f32.mrb[0].mxu0
        %v696 = vadd.f32 0.0, %v695
        %v697 = vpop.f32.mrb[0].mxu0
        %v698 = vadd.f32 0.0, %v697
        %699 = vdwg.mxu0
        %v700 = vmul.f32 %v662, %v337
        %v701 = vmul.f32 %v664, %v338
        %v702 = vmul.f32 %v666, %v337
        %v703 = vmul.f32 %v668, %v338
        %v704 = vmul.f32 %v672, %v337
        %v705 = vmul.f32 %v674, %v338
        %v706 = vmul.f32 %v676, %v337
        %v707 = vmul.f32 %v678, %v338
        %v708 = vmul.f32 %v682, %v337
        %v709 = vmul.f32 %v684, %v338
        %v710 = vmul.f32 %v686, %v337
        %v711 = vmul.f32 %v688, %v338
        %v712 = vmul.f32 %v692, %v337
        %v713 = vmul.f32 %v694, %v338
        %v714 = vmul.f32 %v696, %v337
        %v715 = vmul.f32 %v698, %v338
        %716 = vrot.lane.b32.xlu0 %v351, 1
        %v717 = vpop.permute.xlu0 %716
        %718 = vrot.lane.b32.xlu0 %v353, 1
        %v719 = vpop.permute.xlu0 %718
        %720 = vrot.lane.b32.xlu0 %v355, 1
        %v721 = vpop.permute.xlu0 %720
        %722 = vrot.lane.b32.xlu0 %v357, 1
        %v723 = vpop.permute.xlu0 %722
        %724 = vrot.lane.b32.xlu0 %v359, 1
        %v725 = vpop.permute.xlu0 %724
        %726 = vrot.lane.b32.xlu0 %v361, 1
        %v727 = vpop.permute.xlu0 %726
        %728 = vrot.lane.b32.xlu0 %v363, 1
        %v729 = vpop.permute.xlu0 %728
        %730 = vrot.lane.b32.xlu0 %v365, 1
        %v731 = vpop.permute.xlu0 %730
        %732 = vrot.lane.b32.xlu0 %v352, 1
        %v733 = vpop.permute.xlu0 %732
        %734 = vrot.lane.b32.xlu0 %v354, 1
        %v735 = vpop.permute.xlu0 %734
        %736 = vrot.lane.b32.xlu0 %v356, 1
        %v737 = vpop.permute.xlu0 %736
        %738 = vrot.lane.b32.xlu0 %v358, 1
        %v739 = vpop.permute.xlu0 %738
        %740 = vrot.lane.b32.xlu0 %v360, 1
        %v741 = vpop.permute.xlu0 %740
        %742 = vrot.lane.b32.xlu0 %v362, 1
        %v743 = vpop.permute.xlu0 %742
        %744 = vrot.lane.b32.xlu0 %v364, 1
        %v745 = vpop.permute.xlu0 %744
        %746 = vrot.lane.b32.xlu0 %v366, 1
        %v747 = vpop.permute.xlu0 %746
        %v748 = vsel %vm448, %v717, %v733
        %v749 = vsel %vm448, %v719, %v735
        %v750 = vsel %vm448, %v721, %v737
        %v751 = vsel %vm448, %v723, %v739
        %v752 = vsel %vm448, %v725, %v741
        %v753 = vsel %vm448, %v727, %v743
        %v754 = vsel %vm448, %v729, %v745
        %v755 = vsel %vm448, %v731, %v747
        %v756 = vsel %vm448, %v733, %v717
        %v757 = vsel %vm448, %v735, %v719
        %v758 = vsel %vm448, %v737, %v721
        %v759 = vsel %vm448, %v739, %v723
        %v760 = vsel %vm448, %v741, %v725
        %v761 = vsel %vm448, %v743, %v727
        %v762 = vsel %vm448, %v745, %v729
        %v763 = vsel %vm448, %v747, %v731
        %v764 = vmul.f32 %v756, %v329
        %v765 = vmul.f32 %v748, %v330
        %v766 = vmul.f32 %v757, %v329
        %v767 = vmul.f32 %v749, %v330
        %v768 = vmul.f32 %v758, %v329
        %v769 = vmul.f32 %v750, %v330
        %v770 = vmul.f32 %v759, %v329
        %v771 = vmul.f32 %v751, %v330
        %v772 = vmul.f32 %v760, %v329
        %v773 = vmul.f32 %v752, %v330
        %v774 = vmul.f32 %v761, %v329
        %v775 = vmul.f32 %v753, %v330
        %v776 = vmul.f32 %v762, %v329
        %v777 = vmul.f32 %v754, %v330
        %v778 = vmul.f32 %v763, %v329
        %v779 = vmul.f32 %v755, %v330
        %780 = vrot.lane.b32.xlu0 %v351, 127
        %v781 = vpop.permute.xlu0 %780
        %782 = vrot.lane.b32.xlu0 %v353, 127
        %v783 = vpop.permute.xlu0 %782
        %784 = vrot.lane.b32.xlu0 %v355, 127
        %v785 = vpop.permute.xlu0 %784
        %786 = vrot.lane.b32.xlu0 %v357, 127
        %v787 = vpop.permute.xlu0 %786
        %788 = vrot.lane.b32.xlu0 %v359, 127
        %v789 = vpop.permute.xlu0 %788
        %790 = vrot.lane.b32.xlu0 %v361, 127
        %v791 = vpop.permute.xlu0 %790
        %792 = vrot.lane.b32.xlu0 %v363, 127
        %v793 = vpop.permute.xlu0 %792
        %794 = vrot.lane.b32.xlu0 %v365, 127
        %v795 = vpop.permute.xlu0 %794
        %796 = vrot.lane.b32.xlu0 %v352, 127
        %v797 = vpop.permute.xlu0 %796
        %798 = vrot.lane.b32.xlu0 %v354, 127
        %v799 = vpop.permute.xlu0 %798
        %800 = vrot.lane.b32.xlu0 %v356, 127
        %v801 = vpop.permute.xlu0 %800
        %802 = vrot.lane.b32.xlu0 %v358, 127
        %v803 = vpop.permute.xlu0 %802
        %804 = vrot.lane.b32.xlu0 %v360, 127
        %v805 = vpop.permute.xlu0 %804
        %806 = vrot.lane.b32.xlu0 %v362, 127
        %v807 = vpop.permute.xlu0 %806
        %808 = vrot.lane.b32.xlu0 %v364, 127
        %v809 = vpop.permute.xlu0 %808
        %810 = vrot.lane.b32.xlu0 %v366, 127
        %v811 = vpop.permute.xlu0 %810
        %v812 = vsel %vm513, %v781, %v797
        %v813 = vsel %vm513, %v783, %v799
        %v814 = vsel %vm513, %v785, %v801
        %v815 = vsel %vm513, %v787, %v803
        %v816 = vsel %vm513, %v789, %v805
        %v817 = vsel %vm513, %v791, %v807
        %v818 = vsel %vm513, %v793, %v809
        %v819 = vsel %vm513, %v795, %v811
        %v820 = vsel %vm513, %v797, %v781
        %v821 = vsel %vm513, %v799, %v783
        %v822 = vsel %vm513, %v801, %v785
        %v823 = vsel %vm513, %v803, %v787
        %v824 = vsel %vm513, %v805, %v789
        %v825 = vsel %vm513, %v807, %v791
        %v826 = vsel %vm513, %v809, %v793
        %v827 = vsel %vm513, %v811, %v795
        %v828 = vmul.f32 %v812, %v333
        %v829 = vmul.f32 %v820, %v334
        %v830 = vmul.f32 %v813, %v333
        %v831 = vmul.f32 %v821, %v334
        %v832 = vmul.f32 %v814, %v333
        %v833 = vmul.f32 %v822, %v334
        %v834 = vmul.f32 %v815, %v333
        %v835 = vmul.f32 %v823, %v334
        %v836 = vmul.f32 %v816, %v333
        %v837 = vmul.f32 %v824, %v334
        %v838 = vmul.f32 %v817, %v333
        %v839 = vmul.f32 %v825, %v334
        %v840 = vmul.f32 %v818, %v333
        %v841 = vmul.f32 %v826, %v334
        %v842 = vmul.f32 %v819, %v333
        %v843 = vmul.f32 %v827, %v334
        %v844 = vpack.c.bf16 %v766, %v764
        %v845 = vpack.c.bf16 %v767, %v765
        %v846 = vpack.c.bf16 %v770, %v768
        %v847 = vpack.c.bf16 %v771, %v769
        %v848 = vpack.c.bf16 %v774, %v772
        %v849 = vpack.c.bf16 %v775, %v773
        %v850 = vpack.c.bf16 %v778, %v776
        %v851 = vpack.c.bf16 %v779, %v777
        %v852 = vpack.c.bf16 %v353, %v351
        %v853 = vpack.c.bf16 %v354, %v352
        %v854 = vpack.c.bf16 %v357, %v355
        %v855 = vpack.c.bf16 %v358, %v356
        %v856 = vpack.c.bf16 %v361, %v359
        %v857 = vpack.c.bf16 %v362, %v360
        %v858 = vpack.c.bf16 %v365, %v363
        %v859 = vpack.c.bf16 %v366, %v364
        %v860 = vpack.c.bf16 %v830, %v828
        %v861 = vpack.c.bf16 %v831, %v829
        %v862 = vpack.c.bf16 %v834, %v832
        %v863 = vpack.c.bf16 %v835, %v833
        %v864 = vpack.c.bf16 %v838, %v836
        %v865 = vpack.c.bf16 %v839, %v837
        %v866 = vpack.c.bf16 %v842, %v840
        %v867 = vpack.c.bf16 %v843, %v841
        %s868 = scalar_lea.vmem [#allocation5], 64
        %v869 = vld [vmem:[%s868] sm:$0xff]
        %v870 = vld [vmem:[%s868 + $0x8] sm:$0xff]
        %v871 = vld [vmem:[%s868 + $0x10] sm:$0xff]
        %v872 = vld [vmem:[%s868 + $0x18] sm:$0xff]
        %v873 = vld [vmem:[%s868 + $0x20] sm:$0xff]
        %v874 = vld [vmem:[%s868 + $0x28] sm:$0xff]
        %v875 = vld [vmem:[%s868 + $0x30] sm:$0xff]
        %v876 = vld [vmem:[%s868 + $0x38] sm:$0xff]
        %v885 = vunpack.c.l.b16 %v869
        %v886 = vunpack.c.h.b16 %v869
        %v887 = vunpack.c.l.b16 %v870
        %v888 = vunpack.c.h.b16 %v870
        %v889 = vunpack.c.l.b16 %v871
        %v890 = vunpack.c.h.b16 %v871
        %v891 = vunpack.c.l.b16 %v872
        %v892 = vunpack.c.h.b16 %v872
        %v893 = vunpack.c.l.b16 %v873
        %v894 = vunpack.c.h.b16 %v873
        %v895 = vunpack.c.l.b16 %v874
        %v896 = vunpack.c.h.b16 %v874
        %v897 = vunpack.c.l.b16 %v875
        %v898 = vunpack.c.h.b16 %v875
        %v899 = vunpack.c.l.b16 %v876
        %v900 = vunpack.c.h.b16 %v876
        %v901 = vpack.c.b16 %v887, %v885
        %v902 = vpack.c.b16 %v888, %v886
        %v903 = vpack.c.b16 %v891, %v889
        %v904 = vpack.c.b16 %v892, %v890
        %v905 = vpack.c.b16 %v895, %v893
        %v906 = vpack.c.b16 %v896, %v894
        %v907 = vpack.c.b16 %v899, %v897
        %v908 = vpack.c.b16 %v900, %v898
        %v914 = vsel %vm614, %v902, 0
        %v917 = vsel %vm614, %v904, 0
        %v920 = vsel %vm614, %v906, 0
        %v923 = vsel %vm614, %v908, 0
        %925 = vmatprep.subr.bf16.mxu0 %v845
        %926 = vmatpush1.bf16.msra.mxu0 %v844
        %927 = vmatprep.subr.bf16.mxu0 %v847
        %928 = vmatpush1.bf16.msra.mxu0 %v846
        %929 = vmatprep.subr.bf16.mxu0 %v849
        %930 = vmatpush1.bf16.msra.mxu0 %v848
        %931 = vmatprep.subr.bf16.mxu0 %v851
        %932 = vmatpush1.bf16.msra.mxu0 %v850
        %933 = vmatprep.subr.bf16.mxu0 %v853
        %934 = vmatpush1.bf16.msra.mxu0 %v852
        %935 = vmatprep.subr.bf16.mxu0 %v855
        %936 = vmatpush1.bf16.msra.mxu0 %v854
        %937 = vmatprep.subr.bf16.mxu0 %v857
        %938 = vmatpush1.bf16.msra.mxu0 %v856
        %939 = vmatprep.subr.bf16.mxu0 %v859
        %940 = vmatpush1.bf16.msra.mxu0 %v858
        %941 = vmatprep.subr.bf16.mxu0 %v861
        %942 = vmatpush1.bf16.msra.mxu0 %v860
        %943 = vmatprep.subr.bf16.mxu0 %v863
        %944 = vmatpush1.bf16.msra.mxu0 %v862
        %945 = vmatprep.subr.bf16.mxu0 %v865
        %946 = vmatpush1.bf16.msra.mxu0 %v864
        %947 = vmatprep.subr.bf16.mxu0 %v867
        %948 = vmatpush1.bf16.msra.mxu0 %v866
        %949 = vmatprep.subr.bf16.mxu0 0
        %950 = vmatpush1.bf16.msra.mxu0 0
        %951 = vmatprep.subr.bf16.mxu0 0
        %952 = vmatpush1.bf16.msra.mxu0 0
        %953 = vmatprep.subr.bf16.mxu0 0
        %954 = vmatpush1.bf16.msra.mxu0 0
        %955 = vmatprep.subr.bf16.mxu0 0
        %956 = vmatpush1.bf16.msra.mxu0 0
        %957 = vmatprep.mubr.bf16.mxu0 %v914
        %958 = vmatmul.mubr.bf16.gmra.mrb[0].mxu0 %v901
        %v959 = vpop.f32.mrb[0].mxu0
        %v960 = vadd.f32 0.0, %v959
        %v961 = vpop.f32.mrb[0].mxu0
        %v962 = vadd.f32 0.0, %v961
        %v963 = vpop.f32.mrb[0].mxu0
        %v964 = vadd.f32 0.0, %v963
        %v965 = vpop.f32.mrb[0].mxu0
        %v966 = vadd.f32 0.0, %v965
        %967 = vmatprep.mubr.bf16.mxu0 %v917
        %968 = vmatmul.mubr.bf16.gmra.mrb[0].mxu0 %v903
        %v969 = vpop.f32.mrb[0].mxu0
        %v970 = vadd.f32 0.0, %v969
        %v971 = vpop.f32.mrb[0].mxu0
        %v972 = vadd.f32 0.0, %v971
        %v973 = vpop.f32.mrb[0].mxu0
        %v974 = vadd.f32 0.0, %v973
        %v975 = vpop.f32.mrb[0].mxu0
        %v976 = vadd.f32 0.0, %v975
        %977 = vmatprep.mubr.bf16.mxu0 %v920
        %978 = vmatmul.mubr.bf16.gmra.mrb[0].mxu0 %v905
        %v979 = vpop.f32.mrb[0].mxu0
        %v980 = vadd.f32 0.0, %v979
        %v981 = vpop.f32.mrb[0].mxu0
        %v982 = vadd.f32 0.0, %v981
        %v983 = vpop.f32.mrb[0].mxu0
        %v984 = vadd.f32 0.0, %v983
        %v985 = vpop.f32.mrb[0].mxu0
        %v986 = vadd.f32 0.0, %v985
        %987 = vmatprep.mubr.bf16.mxu0 %v923
        %988 = vmatmul.mubr.bf16.gmra.mrb[0].mxu0 %v907
        %v989 = vpop.f32.mrb[0].mxu0
        %v990 = vadd.f32 0.0, %v989
        %v991 = vpop.f32.mrb[0].mxu0
        %v992 = vadd.f32 0.0, %v991
        %v993 = vpop.f32.mrb[0].mxu0
        %v994 = vadd.f32 0.0, %v993
        %v995 = vpop.f32.mrb[0].mxu0
        %v996 = vadd.f32 0.0, %v995
        %997 = vdwg.mxu0
        %v998 = vadd.f32 %v700, %v960
        %v999 = vadd.f32 %v701, %v962
        %v1000 = vadd.f32 %v702, %v964
        %v1001 = vadd.f32 %v703, %v966
        %v1002 = vadd.f32 %v704, %v970
        %v1003 = vadd.f32 %v705, %v972
        %v1004 = vadd.f32 %v706, %v974
        %v1005 = vadd.f32 %v707, %v976
        %v1006 = vadd.f32 %v708, %v980
        %v1007 = vadd.f32 %v709, %v982
        %v1008 = vadd.f32 %v710, %v984
        %v1009 = vadd.f32 %v711, %v986
        %v1010 = vadd.f32 %v712, %v990
        %v1011 = vadd.f32 %v713, %v992
        %v1012 = vadd.f32 %v714, %v994
        %v1013 = vadd.f32 %v715, %v996
        %1014 = vrot.lane.b32.xlu0 %v351, 112
        %v1015 = vpop.permute.xlu0 %1014
        %1016 = vrot.lane.b32.xlu0 %v353, 112
        %v1017 = vpop.permute.xlu0 %1016
        %1018 = vrot.lane.b32.xlu0 %v355, 112
        %v1019 = vpop.permute.xlu0 %1018
        %1020 = vrot.lane.b32.xlu0 %v357, 112
        %v1021 = vpop.permute.xlu0 %1020
        %1022 = vrot.lane.b32.xlu0 %v359, 112
        %v1023 = vpop.permute.xlu0 %1022
        %1024 = vrot.lane.b32.xlu0 %v361, 112
        %v1025 = vpop.permute.xlu0 %1024
        %1026 = vrot.lane.b32.xlu0 %v363, 112
        %v1027 = vpop.permute.xlu0 %1026
        %1028 = vrot.lane.b32.xlu0 %v365, 112
        %v1029 = vpop.permute.xlu0 %1028
        %1030 = vrot.lane.b32.xlu0 %v352, 112
        %v1031 = vpop.permute.xlu0 %1030
        %1032 = vrot.lane.b32.xlu0 %v354, 112
        %v1033 = vpop.permute.xlu0 %1032
        %1034 = vrot.lane.b32.xlu0 %v356, 112
        %v1035 = vpop.permute.xlu0 %1034
        %1036 = vrot.lane.b32.xlu0 %v358, 112
        %v1037 = vpop.permute.xlu0 %1036
        %1038 = vrot.lane.b32.xlu0 %v360, 112
        %v1039 = vpop.permute.xlu0 %1038
        %1040 = vrot.lane.b32.xlu0 %v362, 112
        %v1041 = vpop.permute.xlu0 %1040
        %1042 = vrot.lane.b32.xlu0 %v364, 112
        %v1043 = vpop.permute.xlu0 %1042
        %1044 = vrot.lane.b32.xlu0 %v366, 112
        %v1045 = vpop.permute.xlu0 %1044
        %vm1046 = vcmp.lt.s32.totalorder %v301, 112
        %v1047 = vsel %vm1046, %v1015, %v1031
        %v1048 = vsel %vm1046, %v1017, %v1033
        %v1049 = vsel %vm1046, %v1019, %v1035
        %v1050 = vsel %vm1046, %v1021, %v1037
        %v1051 = vsel %vm1046, %v1023, %v1039
        %v1052 = vsel %vm1046, %v1025, %v1041
        %v1053 = vsel %vm1046, %v1027, %v1043
        %v1054 = vsel %vm1046, %v1029, %v1045
        %v1055 = vsel %vm1046, %v1031, %v1015
        %v1056 = vsel %vm1046, %v1033, %v1017
        %v1057 = vsel %vm1046, %v1035, %v1019
        %v1058 = vsel %vm1046, %v1037, %v1021
        %v1059 = vsel %vm1046, %v1039, %v1023
        %v1060 = vsel %vm1046, %v1041, %v1025
        %v1061 = vsel %vm1046, %v1043, %v1027
        %v1062 = vsel %vm1046, %v1045, %v1029
        %1063 = vrot.lane.b32.xlu0 %v1047, 1
        %v1064 = vpop.permute.xlu0 %1063
        %1065 = vrot.lane.b32.xlu0 %v1048, 1
        %v1066 = vpop.permute.xlu0 %1065
        %1067 = vrot.lane.b32.xlu0 %v1049, 1
        %v1068 = vpop.permute.xlu0 %1067
        %1069 = vrot.lane.b32.xlu0 %v1050, 1
        %v1070 = vpop.permute.xlu0 %1069
        %1071 = vrot.lane.b32.xlu0 %v1051, 1
        %v1072 = vpop.permute.xlu0 %1071
        %1073 = vrot.lane.b32.xlu0 %v1052, 1
        %v1074 = vpop.permute.xlu0 %1073
        %1075 = vrot.lane.b32.xlu0 %v1053, 1
        %v1076 = vpop.permute.xlu0 %1075
        %1077 = vrot.lane.b32.xlu0 %v1054, 1
        %v1078 = vpop.permute.xlu0 %1077
        %1079 = vrot.lane.b32.xlu0 %v1055, 1
        %v1080 = vpop.permute.xlu0 %1079
        %1081 = vrot.lane.b32.xlu0 %v1056, 1
        %v1082 = vpop.permute.xlu0 %1081
        %1083 = vrot.lane.b32.xlu0 %v1057, 1
        %v1084 = vpop.permute.xlu0 %1083
        %1085 = vrot.lane.b32.xlu0 %v1058, 1
        %v1086 = vpop.permute.xlu0 %1085
        %1087 = vrot.lane.b32.xlu0 %v1059, 1
        %v1088 = vpop.permute.xlu0 %1087
        %1089 = vrot.lane.b32.xlu0 %v1060, 1
        %v1090 = vpop.permute.xlu0 %1089
        %1091 = vrot.lane.b32.xlu0 %v1061, 1
        %v1092 = vpop.permute.xlu0 %1091
        %1093 = vrot.lane.b32.xlu0 %v1062, 1
        %v1094 = vpop.permute.xlu0 %1093
        %v1095 = vsel %vm448, %v1064, %v1080
        %v1096 = vsel %vm448, %v1066, %v1082
        %v1097 = vsel %vm448, %v1068, %v1084
        %v1098 = vsel %vm448, %v1070, %v1086
        %v1099 = vsel %vm448, %v1072, %v1088
        %v1100 = vsel %vm448, %v1074, %v1090
        %v1101 = vsel %vm448, %v1076, %v1092
        %v1102 = vsel %vm448, %v1078, %v1094
        %v1103 = vsel %vm448, %v1080, %v1064
        %v1104 = vsel %vm448, %v1082, %v1066
        %v1105 = vsel %vm448, %v1084, %v1068
        %v1106 = vsel %vm448, %v1086, %v1070
        %v1107 = vsel %vm448, %v1088, %v1072
        %v1108 = vsel %vm448, %v1090, %v1074
        %v1109 = vsel %vm448, %v1092, %v1076
        %v1110 = vsel %vm448, %v1094, %v1078
        %v1111 = vmul.f32 %v1103, %v329
        %v1112 = vmul.f32 %v1095, %v330
        %v1113 = vmul.f32 %v1104, %v329
        %v1114 = vmul.f32 %v1096, %v330
        %v1115 = vmul.f32 %v1105, %v329
        %v1116 = vmul.f32 %v1097, %v330
        %v1117 = vmul.f32 %v1106, %v329
        %v1118 = vmul.f32 %v1098, %v330
        %v1119 = vmul.f32 %v1107, %v329
        %v1120 = vmul.f32 %v1099, %v330
        %v1121 = vmul.f32 %v1108, %v329
        %v1122 = vmul.f32 %v1100, %v330
        %v1123 = vmul.f32 %v1109, %v329
        %v1124 = vmul.f32 %v1101, %v330
        %v1125 = vmul.f32 %v1110, %v329
        %v1126 = vmul.f32 %v1102, %v330
        %1127 = vrot.lane.b32.xlu0 %v1047, 127
        %v1128 = vpop.permute.xlu0 %1127
        %1129 = vrot.lane.b32.xlu0 %v1048, 127
        %v1130 = vpop.permute.xlu0 %1129
        %1131 = vrot.lane.b32.xlu0 %v1049, 127
        %v1132 = vpop.permute.xlu0 %1131
        %1133 = vrot.lane.b32.xlu0 %v1050, 127
        %v1134 = vpop.permute.xlu0 %1133
        %1135 = vrot.lane.b32.xlu0 %v1051, 127
        %v1136 = vpop.permute.xlu0 %1135
        %1137 = vrot.lane.b32.xlu0 %v1052, 127
        %v1138 = vpop.permute.xlu0 %1137
        %1139 = vrot.lane.b32.xlu0 %v1053, 127
        %v1140 = vpop.permute.xlu0 %1139
        %1141 = vrot.lane.b32.xlu0 %v1054, 127
        %v1142 = vpop.permute.xlu0 %1141
        %1143 = vrot.lane.b32.xlu0 %v1055, 127
        %v1144 = vpop.permute.xlu0 %1143
        %1145 = vrot.lane.b32.xlu0 %v1056, 127
        %v1146 = vpop.permute.xlu0 %1145
        %1147 = vrot.lane.b32.xlu0 %v1057, 127
        %v1148 = vpop.permute.xlu0 %1147
        %1149 = vrot.lane.b32.xlu0 %v1058, 127
        %v1150 = vpop.permute.xlu0 %1149
        %1151 = vrot.lane.b32.xlu0 %v1059, 127
        %v1152 = vpop.permute.xlu0 %1151
        %1153 = vrot.lane.b32.xlu0 %v1060, 127
        %v1154 = vpop.permute.xlu0 %1153
        %1155 = vrot.lane.b32.xlu0 %v1061, 127
        %v1156 = vpop.permute.xlu0 %1155
        %1157 = vrot.lane.b32.xlu0 %v1062, 127
        %v1158 = vpop.permute.xlu0 %1157
        %v1159 = vsel %vm513, %v1128, %v1144
        %v1160 = vsel %vm513, %v1130, %v1146
        %v1161 = vsel %vm513, %v1132, %v1148
        %v1162 = vsel %vm513, %v1134, %v1150
        %v1163 = vsel %vm513, %v1136, %v1152
        %v1164 = vsel %vm513, %v1138, %v1154
        %v1165 = vsel %vm513, %v1140, %v1156
        %v1166 = vsel %vm513, %v1142, %v1158
        %v1167 = vsel %vm513, %v1144, %v1128
        %v1168 = vsel %vm513, %v1146, %v1130
        %v1169 = vsel %vm513, %v1148, %v1132
        %v1170 = vsel %vm513, %v1150, %v1134
        %v1171 = vsel %vm513, %v1152, %v1136
        %v1172 = vsel %vm513, %v1154, %v1138
        %v1173 = vsel %vm513, %v1156, %v1140
        %v1174 = vsel %vm513, %v1158, %v1142
        %v1175 = vmul.f32 %v1159, %v333
        %v1176 = vmul.f32 %v1167, %v334
        %v1177 = vmul.f32 %v1160, %v333
        %v1178 = vmul.f32 %v1168, %v334
        %v1179 = vmul.f32 %v1161, %v333
        %v1180 = vmul.f32 %v1169, %v334
        %v1181 = vmul.f32 %v1162, %v333
        %v1182 = vmul.f32 %v1170, %v334
        %v1183 = vmul.f32 %v1163, %v333
        %v1184 = vmul.f32 %v1171, %v334
        %v1185 = vmul.f32 %v1164, %v333
        %v1186 = vmul.f32 %v1172, %v334
        %v1187 = vmul.f32 %v1165, %v333
        %v1188 = vmul.f32 %v1173, %v334
        %v1189 = vmul.f32 %v1166, %v333
        %v1190 = vmul.f32 %v1174, %v334
        %v1191 = vpack.c.bf16 %v1113, %v1111
        %v1192 = vpack.c.bf16 %v1114, %v1112
        %v1193 = vpack.c.bf16 %v1117, %v1115
        %v1194 = vpack.c.bf16 %v1118, %v1116
        %v1195 = vpack.c.bf16 %v1121, %v1119
        %v1196 = vpack.c.bf16 %v1122, %v1120
        %v1197 = vpack.c.bf16 %v1125, %v1123
        %v1198 = vpack.c.bf16 %v1126, %v1124
        %v1199 = vpack.c.bf16 %v1048, %v1047
        %v1200 = vpack.c.bf16 %v1056, %v1055
        %v1201 = vpack.c.bf16 %v1050, %v1049
        %v1202 = vpack.c.bf16 %v1058, %v1057
        %v1203 = vpack.c.bf16 %v1052, %v1051
        %v1204 = vpack.c.bf16 %v1060, %v1059
        %v1205 = vpack.c.bf16 %v1054, %v1053
        %v1206 = vpack.c.bf16 %v1062, %v1061
        %v1207 = vpack.c.bf16 %v1177, %v1175
        %v1208 = vpack.c.bf16 %v1178, %v1176
        %v1209 = vpack.c.bf16 %v1181, %v1179
        %v1210 = vpack.c.bf16 %v1182, %v1180
        %v1211 = vpack.c.bf16 %v1185, %v1183
        %v1212 = vpack.c.bf16 %v1186, %v1184
        %v1213 = vpack.c.bf16 %v1189, %v1187
        %v1214 = vpack.c.bf16 %v1190, %v1188
        %s1215 = scalar_lea.vmem [#allocation5], 128
        %v1216 = vld [vmem:[%s1215] sm:$0xff]
        %v1217 = vld [vmem:[%s1215 + $0x8] sm:$0xff]
        %v1218 = vld [vmem:[%s1215 + $0x10] sm:$0xff]
        %v1219 = vld [vmem:[%s1215 + $0x18] sm:$0xff]
        %v1220 = vld [vmem:[%s1215 + $0x20] sm:$0xff]
        %v1221 = vld [vmem:[%s1215 + $0x28] sm:$0xff]
        %v1222 = vld [vmem:[%s1215 + $0x30] sm:$0xff]
        %v1223 = vld [vmem:[%s1215 + $0x38] sm:$0xff]
        %v1232 = vunpack.c.l.b16 %v1216
        %v1233 = vunpack.c.h.b16 %v1216
        %v1234 = vunpack.c.l.b16 %v1217
        %v1235 = vunpack.c.h.b16 %v1217
        %v1236 = vunpack.c.l.b16 %v1218
        %v1237 = vunpack.c.h.b16 %v1218
        %v1238 = vunpack.c.l.b16 %v1219
        %v1239 = vunpack.c.h.b16 %v1219
        %v1240 = vunpack.c.l.b16 %v1220
        %v1241 = vunpack.c.h.b16 %v1220
        %v1242 = vunpack.c.l.b16 %v1221
        %v1243 = vunpack.c.h.b16 %v1221
        %v1244 = vunpack.c.l.b16 %v1222
        %v1245 = vunpack.c.h.b16 %v1222
        %v1246 = vunpack.c.l.b16 %v1223
        %v1247 = vunpack.c.h.b16 %v1223
        %v1248 = vpack.c.b16 %v1234, %v1232
        %v1249 = vpack.c.b16 %v1235, %v1233
        %v1250 = vpack.c.b16 %v1238, %v1236
        %v1251 = vpack.c.b16 %v1239, %v1237
        %v1252 = vpack.c.b16 %v1242, %v1240
        %v1253 = vpack.c.b16 %v1243, %v1241
        %v1254 = vpack.c.b16 %v1246, %v1244
        %v1255 = vpack.c.b16 %v1247, %v1245
        %v1261 = vsel %vm614, %v1249, 0
        %v1264 = vsel %vm614, %v1251, 0
        %v1267 = vsel %vm614, %v1253, 0
        %v1270 = vsel %vm614, %v1255, 0
        %1272 = vmatprep.subr.bf16.mxu0 %v1192
        %1273 = vmatpush1.bf16.msra.mxu0 %v1191
        %1274 = vmatprep.subr.bf16.mxu0 %v1194
        %1275 = vmatpush1.bf16.msra.mxu0 %v1193
        %1276 = vmatprep.subr.bf16.mxu0 %v1196
        %1277 = vmatpush1.bf16.msra.mxu0 %v1195
        %1278 = vmatprep.subr.bf16.mxu0 %v1198
        %1279 = vmatpush1.bf16.msra.mxu0 %v1197
        %1280 = vmatprep.subr.bf16.mxu0 %v1200
        %1281 = vmatpush1.bf16.msra.mxu0 %v1199
        %1282 = vmatprep.subr.bf16.mxu0 %v1202
        %1283 = vmatpush1.bf16.msra.mxu0 %v1201
        %1284 = vmatprep.subr.bf16.mxu0 %v1204
        %1285 = vmatpush1.bf16.msra.mxu0 %v1203
        %1286 = vmatprep.subr.bf16.mxu0 %v1206
        %1287 = vmatpush1.bf16.msra.mxu0 %v1205
        %1288 = vmatprep.subr.bf16.mxu0 %v1208
        %1289 = vmatpush1.bf16.msra.mxu0 %v1207
        %1290 = vmatprep.subr.bf16.mxu0 %v1210
        %1291 = vmatpush1.bf16.msra.mxu0 %v1209
        %1292 = vmatprep.subr.bf16.mxu0 %v1212
        %1293 = vmatpush1.bf16.msra.mxu0 %v1211
        %1294 = vmatprep.subr.bf16.mxu0 %v1214
        %1295 = vmatpush1.bf16.msra.mxu0 %v1213
        %1296 = vmatprep.subr.bf16.mxu0 0
        %1297 = vmatpush1.bf16.msra.mxu0 0
        %1298 = vmatprep.subr.bf16.mxu0 0
        %1299 = vmatpush1.bf16.msra.mxu0 0
        %1300 = vmatprep.subr.bf16.mxu0 0
        %1301 = vmatpush1.bf16.msra.mxu0 0
        %1302 = vmatprep.subr.bf16.mxu0 0
        %1303 = vmatpush1.bf16.msra.mxu0 0
        %1304 = vmatprep.mubr.bf16.mxu0 %v1261
        %1305 = vmatmul.mubr.bf16.gmra.mrb[0].mxu0 %v1248
        %v1306 = vpop.f32.mrb[0].mxu0
        %v1307 = vadd.f32 0.0, %v1306
        %v1308 = vpop.f32.mrb[0].mxu0
        %v1309 = vadd.f32 0.0, %v1308
        %v1310 = vpop.f32.mrb[0].mxu0
        %v1311 = vadd.f32 0.0, %v1310
        %v1312 = vpop.f32.mrb[0].mxu0
        %v1313 = vadd.f32 0.0, %v1312
        %1314 = vmatprep.mubr.bf16.mxu0 %v1264
        %1315 = vmatmul.mubr.bf16.gmra.mrb[0].mxu0 %v1250
        %v1316 = vpop.f32.mrb[0].mxu0
        %v1317 = vadd.f32 0.0, %v1316
        %v1318 = vpop.f32.mrb[0].mxu0
        %v1319 = vadd.f32 0.0, %v1318
        %v1320 = vpop.f32.mrb[0].mxu0
        %v1321 = vadd.f32 0.0, %v1320
        %v1322 = vpop.f32.mrb[0].mxu0
        %v1323 = vadd.f32 0.0, %v1322
        %1324 = vmatprep.mubr.bf16.mxu0 %v1267
        %1325 = vmatmul.mubr.bf16.gmra.mrb[0].mxu0 %v1252
        %v1326 = vpop.f32.mrb[0].mxu0
        %v1327 = vadd.f32 0.0, %v1326
        %v1328 = vpop.f32.mrb[0].mxu0
        %v1329 = vadd.f32 0.0, %v1328
        %v1330 = vpop.f32.mrb[0].mxu0
        %v1331 = vadd.f32 0.0, %v1330
        %v1332 = vpop.f32.mrb[0].mxu0
        %v1333 = vadd.f32 0.0, %v1332
        %1334 = vmatprep.mubr.bf16.mxu0 %v1270
        %1335 = vmatmul.mubr.bf16.gmra.mrb[0].mxu0 %v1254
        %v1336 = vpop.f32.mrb[0].mxu0
        %v1337 = vadd.f32 0.0, %v1336
        %v1338 = vpop.f32.mrb[0].mxu0
        %v1339 = vadd.f32 0.0, %v1338
        %v1340 = vpop.f32.mrb[0].mxu0
        %v1341 = vadd.f32 0.0, %v1340
        %v1342 = vpop.f32.mrb[0].mxu0
        %v1343 = vadd.f32 0.0, %v1342
        %1344 = vdwg.mxu0
        %v1345 = vmul.f32 %v1307, %v341
        %v1346 = vmul.f32 %v1309, %v342
        %v1347 = vmul.f32 %v1311, %v341
        %v1348 = vmul.f32 %v1313, %v342
        %v1349 = vmul.f32 %v1317, %v341
        %v1350 = vmul.f32 %v1319, %v342
        %v1351 = vmul.f32 %v1321, %v341
        %v1352 = vmul.f32 %v1323, %v342
        %v1353 = vmul.f32 %v1327, %v341
        %v1354 = vmul.f32 %v1329, %v342
        %v1355 = vmul.f32 %v1331, %v341
        %v1356 = vmul.f32 %v1333, %v342
        %v1357 = vmul.f32 %v1337, %v341
        %v1358 = vmul.f32 %v1339, %v342
        %v1359 = vmul.f32 %v1341, %v341
        %v1360 = vmul.f32 %v1343, %v342
        %v1361 = vadd.f32 %v998, %v1345
        %v1362 = vadd.f32 %v999, %v1346
        %v1363 = vadd.f32 %v1000, %v1347
        %v1364 = vadd.f32 %v1001, %v1348
        %v1365 = vadd.f32 %v1002, %v1349
        %v1366 = vadd.f32 %v1003, %v1350
        %v1367 = vadd.f32 %v1004, %v1351
        %v1368 = vadd.f32 %v1005, %v1352
        %v1369 = vadd.f32 %v1006, %v1353
        %v1370 = vadd.f32 %v1007, %v1354
        %v1371 = vadd.f32 %v1008, %v1355
        %v1372 = vadd.f32 %v1009, %v1356
        %v1373 = vadd.f32 %v1010, %v1357
        %v1374 = vadd.f32 %v1011, %v1358
        %v1375 = vadd.f32 %v1012, %v1359
        %v1376 = vadd.f32 %v1013, %v1360
        %v1377 = vld [vmem:[#allocation7] sm:$0xff]
        %v1378 = vld [vmem:[#allocation7 + $0x8] sm:$0xff]
        %v1379 = vld [vmem:[#allocation7 + $0x10] sm:$0xff]
        %v1380 = vld [vmem:[#allocation7 + $0x18] sm:$0xff]
        %v1381 = vld [vmem:[#allocation7 + $0x20] sm:$0xff]
        %v1382 = vld [vmem:[#allocation7 + $0x28] sm:$0xff]
        %v1383 = vld [vmem:[#allocation7 + $0x30] sm:$0xff]
        %v1384 = vld [vmem:[#allocation7 + $0x38] sm:$0xff]
        %1386 = vset.pattern.permute.xlu0 0
        %1387 = vperm.xlu0 %1386, %v1377
        %v1388 = vpop.permute.xlu0 %1387
        %1391 = vset.pattern.permute.xlu0 0
        %1392 = vperm.xlu0 %1391, %v1378
        %v1393 = vpop.permute.xlu0 %1392
        %1396 = vset.pattern.permute.xlu0 0
        %1397 = vperm.xlu0 %1396, %v1379
        %v1398 = vpop.permute.xlu0 %1397
        %1401 = vset.pattern.permute.xlu0 0
        %1402 = vperm.xlu0 %1401, %v1380
        %v1403 = vpop.permute.xlu0 %1402
        %1406 = vset.pattern.permute.xlu0 0
        %1407 = vperm.xlu0 %1406, %v1381
        %v1408 = vpop.permute.xlu0 %1407
        %1411 = vset.pattern.permute.xlu0 0
        %1412 = vperm.xlu0 %1411, %v1382
        %v1413 = vpop.permute.xlu0 %1412
        %1416 = vset.pattern.permute.xlu0 0
        %1417 = vperm.xlu0 %1416, %v1383
        %v1418 = vpop.permute.xlu0 %1417
        %1421 = vset.pattern.permute.xlu0 0
        %1422 = vperm.xlu0 %1421, %v1384
        %v1423 = vpop.permute.xlu0 %1422
        %v1425 = vadd.f32 %v1361, %v1388
        %v1426 = vadd.f32 %v1362, %v1388
        %v1427 = vadd.f32 %v1363, %v1393
        %v1428 = vadd.f32 %v1364, %v1393
        %v1429 = vadd.f32 %v1365, %v1398
        %v1430 = vadd.f32 %v1366, %v1398
        %v1431 = vadd.f32 %v1367, %v1403
        %v1432 = vadd.f32 %v1368, %v1403
        %v1433 = vadd.f32 %v1369, %v1408
        %v1434 = vadd.f32 %v1370, %v1408
        %v1435 = vadd.f32 %v1371, %v1413
        %v1436 = vadd.f32 %v1372, %v1413
        %v1437 = vadd.f32 %v1373, %v1418
        %v1438 = vadd.f32 %v1374, %v1418
        %v1439 = vadd.f32 %v1375, %v1423
        %v1440 = vadd.f32 %v1376, %v1423
        %v1441 = vadd.f32 %v1425, %v1426
        %1442 = vadd.xlane.f32.xlu0 %v1441
        %v1443 = vpop.xlane.xlu0 %1442
        %v1444 = vadd.f32 %v1427, %v1428
        %1445 = vadd.xlane.f32.xlu0 %v1444
        %v1446 = vpop.xlane.xlu0 %1445
        %v1447 = vadd.f32 %v1429, %v1430
        %1448 = vadd.xlane.f32.xlu0 %v1447
        %v1449 = vpop.xlane.xlu0 %1448
        %v1450 = vadd.f32 %v1431, %v1432
        %1451 = vadd.xlane.f32.xlu0 %v1450
        %v1452 = vpop.xlane.xlu0 %1451
        %v1453 = vadd.f32 %v1433, %v1434
        %1454 = vadd.xlane.f32.xlu0 %v1453
        %v1455 = vpop.xlane.xlu0 %1454
        %v1456 = vadd.f32 %v1435, %v1436
        %1457 = vadd.xlane.f32.xlu0 %v1456
        %v1458 = vpop.xlane.xlu0 %1457
        %v1459 = vadd.f32 %v1437, %v1438
        %1460 = vadd.xlane.f32.xlu0 %v1459
        %v1461 = vpop.xlane.xlu0 %1460
        %v1462 = vadd.f32 %v1439, %v1440
        %1463 = vadd.xlane.f32.xlu0 %v1462
        %v1464 = vpop.xlane.xlu0 %1463
        %v1465 = vmul.f32 %v1425, %v1425
        %v1466 = vmul.f32 %v1426, %v1426
        %v1467 = vmul.f32 %v1427, %v1427
        %v1468 = vmul.f32 %v1428, %v1428
        %v1469 = vmul.f32 %v1429, %v1429
        %v1470 = vmul.f32 %v1430, %v1430
        %v1471 = vmul.f32 %v1431, %v1431
        %v1472 = vmul.f32 %v1432, %v1432
        %v1473 = vmul.f32 %v1433, %v1433
        %v1474 = vmul.f32 %v1434, %v1434
        %v1475 = vmul.f32 %v1435, %v1435
        %v1476 = vmul.f32 %v1436, %v1436
        %v1477 = vmul.f32 %v1437, %v1437
        %v1478 = vmul.f32 %v1438, %v1438
        %v1479 = vmul.f32 %v1439, %v1439
        %v1480 = vmul.f32 %v1440, %v1440
        %v1481 = vadd.f32 %v1465, %v1466
        %1482 = vadd.xlane.f32.xlu0 %v1481
        %v1483 = vpop.xlane.xlu0 %1482
        %v1484 = vadd.f32 %v1467, %v1468
        %1485 = vadd.xlane.f32.xlu0 %v1484
        %v1486 = vpop.xlane.xlu0 %1485
        %v1487 = vadd.f32 %v1469, %v1470
        %1488 = vadd.xlane.f32.xlu0 %v1487
        %v1489 = vpop.xlane.xlu0 %1488
        %v1490 = vadd.f32 %v1471, %v1472
        %1491 = vadd.xlane.f32.xlu0 %v1490
        %v1492 = vpop.xlane.xlu0 %1491
        %v1493 = vadd.f32 %v1473, %v1474
        %1494 = vadd.xlane.f32.xlu0 %v1493
        %v1495 = vpop.xlane.xlu0 %1494
        %v1496 = vadd.f32 %v1475, %v1476
        %1497 = vadd.xlane.f32.xlu0 %v1496
        %v1498 = vpop.xlane.xlu0 %1497
        %v1499 = vadd.f32 %v1477, %v1478
        %1500 = vadd.xlane.f32.xlu0 %v1499
        %v1501 = vpop.xlane.xlu0 %1500
        %v1502 = vadd.f32 %v1479, %v1480
        %1503 = vadd.xlane.f32.xlu0 %v1502
        %v1504 = vpop.xlane.xlu0 %1503
        %v1505 = vmul.f32 %v1443, 0.00390625
        %v1506 = vmul.f32 %v1446, 0.00390625
        %v1507 = vmul.f32 %v1449, 0.00390625
        %v1508 = vmul.f32 %v1452, 0.00390625
        %v1509 = vmul.f32 %v1455, 0.00390625
        %v1510 = vmul.f32 %v1458, 0.00390625
        %v1511 = vmul.f32 %v1461, 0.00390625
        %v1512 = vmul.f32 %v1464, 0.00390625
        %v1513 = vmul.f32 %v1483, 0.00390625
        %v1514 = vmul.f32 %v1486, 0.00390625
        %v1515 = vmul.f32 %v1489, 0.00390625
        %v1516 = vmul.f32 %v1492, 0.00390625
        %v1517 = vmul.f32 %v1495, 0.00390625
        %v1518 = vmul.f32 %v1498, 0.00390625
        %v1519 = vmul.f32 %v1501, 0.00390625
        %v1520 = vmul.f32 %v1504, 0.00390625
        %v1521 = vmul.f32 %v1505, %v1505
        %v1522 = vmul.f32 %v1506, %v1506
        %v1523 = vmul.f32 %v1507, %v1507
        %v1524 = vmul.f32 %v1508, %v1508
        %v1525 = vmul.f32 %v1509, %v1509
        %v1526 = vmul.f32 %v1510, %v1510
        %v1527 = vmul.f32 %v1511, %v1511
        %v1528 = vmul.f32 %v1512, %v1512
        %v1529 = vsub.f32 %v1513, %v1521
        %v1530 = vsub.f32 %v1514, %v1522
        %v1531 = vsub.f32 %v1515, %v1523
        %v1532 = vsub.f32 %v1516, %v1524
        %v1533 = vsub.f32 %v1517, %v1525
        %v1534 = vsub.f32 %v1518, %v1526
        %v1535 = vsub.f32 %v1519, %v1527
        %v1536 = vsub.f32 %v1520, %v1528
        %v1537 = vsub.f32 %v1425, %v1505
        %v1538 = vsub.f32 %v1426, %v1505
        %v1539 = vsub.f32 %v1427, %v1506
        %v1540 = vsub.f32 %v1428, %v1506
        %v1541 = vsub.f32 %v1429, %v1507
        %v1542 = vsub.f32 %v1430, %v1507
        %v1543 = vsub.f32 %v1431, %v1508
        %v1544 = vsub.f32 %v1432, %v1508
        %v1545 = vsub.f32 %v1433, %v1509
        %v1546 = vsub.f32 %v1434, %v1509
        %v1547 = vsub.f32 %v1435, %v1510
        %v1548 = vsub.f32 %v1436, %v1510
        %v1549 = vsub.f32 %v1437, %v1511
        %v1550 = vsub.f32 %v1438, %v1511
        %v1551 = vsub.f32 %v1439, %v1512
        %v1552 = vsub.f32 %v1440, %v1512
        %v1553 = vadd.f32 %v1529, 1e-05
        %v1554 = vadd.f32 %v1530, 1e-05
        %v1555 = vadd.f32 %v1531, 1e-05
        %v1556 = vadd.f32 %v1532, 1e-05
        %v1557 = vadd.f32 %v1533, 1e-05
        %v1558 = vadd.f32 %v1534, 1e-05
        %v1559 = vadd.f32 %v1535, 1e-05
        %v1560 = vadd.f32 %v1536, 1e-05
        %v1561 = vrsqrt.pop %v1553
        %v1562 = vrsqrt.pop %v1554
        %v1563 = vrsqrt.pop %v1555
        %v1564 = vrsqrt.pop %v1556
        %v1565 = vrsqrt.pop %v1557
        %v1566 = vrsqrt.pop %v1558
        %v1567 = vrsqrt.pop %v1559
        %v1568 = vrsqrt.pop %v1560
        %v1569 = vmul.f32 %v1537, %v1561
        %v1570 = vmul.f32 %v1538, %v1561
        %v1571 = vmul.f32 %v1539, %v1562
        %v1572 = vmul.f32 %v1540, %v1562
        %v1573 = vmul.f32 %v1541, %v1563
        %v1574 = vmul.f32 %v1542, %v1563
        %v1575 = vmul.f32 %v1543, %v1564
        %v1576 = vmul.f32 %v1544, %v1564
        %v1577 = vmul.f32 %v1545, %v1565
        %v1578 = vmul.f32 %v1546, %v1565
        %v1579 = vmul.f32 %v1547, %v1566
        %v1580 = vmul.f32 %v1548, %v1566
        %v1581 = vmul.f32 %v1549, %v1567
        %v1582 = vmul.f32 %v1550, %v1567
        %v1583 = vmul.f32 %v1551, %v1568
        %v1584 = vmul.f32 %v1552, %v1568
        %v1585 = vmax.f32 %v1569, 0.0
        %v1586 = vmax.f32 %v1570, 0.0
        %v1587 = vmax.f32 %v1571, 0.0
        %v1588 = vmax.f32 %v1572, 0.0
        %v1589 = vmax.f32 %v1573, 0.0
        %v1590 = vmax.f32 %v1574, 0.0
        %v1591 = vmax.f32 %v1575, 0.0
        %v1592 = vmax.f32 %v1576, 0.0
        %v1593 = vmax.f32 %v1577, 0.0
        %v1594 = vmax.f32 %v1578, 0.0
        %v1595 = vmax.f32 %v1579, 0.0
        %v1596 = vmax.f32 %v1580, 0.0
        %v1597 = vmax.f32 %v1581, 0.0
        %v1598 = vmax.f32 %v1582, 0.0
        %v1599 = vmax.f32 %v1583, 0.0
        %v1600 = vmax.f32 %v1584, 0.0
        %1601 = vrot.lane.b32.xlu0 %v1585, 16
        %v1602 = vpop.permute.xlu0 %1601
        %1603 = vrot.lane.b32.xlu0 %v1587, 16
        %v1604 = vpop.permute.xlu0 %1603
        %1605 = vrot.lane.b32.xlu0 %v1589, 16
        %v1606 = vpop.permute.xlu0 %1605
        %1607 = vrot.lane.b32.xlu0 %v1591, 16
        %v1608 = vpop.permute.xlu0 %1607
        %1609 = vrot.lane.b32.xlu0 %v1593, 16
        %v1610 = vpop.permute.xlu0 %1609
        %1611 = vrot.lane.b32.xlu0 %v1595, 16
        %v1612 = vpop.permute.xlu0 %1611
        %1613 = vrot.lane.b32.xlu0 %v1597, 16
        %v1614 = vpop.permute.xlu0 %1613
        %1615 = vrot.lane.b32.xlu0 %v1599, 16
        %v1616 = vpop.permute.xlu0 %1615
        %1617 = vrot.lane.b32.xlu0 %v1586, 16
        %v1618 = vpop.permute.xlu0 %1617
        %1619 = vrot.lane.b32.xlu0 %v1588, 16
        %v1620 = vpop.permute.xlu0 %1619
        %1621 = vrot.lane.b32.xlu0 %v1590, 16
        %v1622 = vpop.permute.xlu0 %1621
        %1623 = vrot.lane.b32.xlu0 %v1592, 16
        %v1624 = vpop.permute.xlu0 %1623
        %1625 = vrot.lane.b32.xlu0 %v1594, 16
        %v1626 = vpop.permute.xlu0 %1625
        %1627 = vrot.lane.b32.xlu0 %v1596, 16
        %v1628 = vpop.permute.xlu0 %1627
        %1629 = vrot.lane.b32.xlu0 %v1598, 16
        %v1630 = vpop.permute.xlu0 %1629
        %1631 = vrot.lane.b32.xlu0 %v1600, 16
        %v1632 = vpop.permute.xlu0 %1631
        %v1633 = vsel %vm399, %v1602, %v1618
        %v1634 = vsel %vm399, %v1604, %v1620
        %v1635 = vsel %vm399, %v1606, %v1622
        %v1636 = vsel %vm399, %v1608, %v1624
        %v1637 = vsel %vm399, %v1610, %v1626
        %v1638 = vsel %vm399, %v1612, %v1628
        %v1639 = vsel %vm399, %v1614, %v1630
        %v1640 = vsel %vm399, %v1616, %v1632
        %v1641 = vsel %vm399, %v1618, %v1602
        %v1642 = vsel %vm399, %v1620, %v1604
        %v1643 = vsel %vm399, %v1622, %v1606
        %v1644 = vsel %vm399, %v1624, %v1608
        %v1645 = vsel %vm399, %v1626, %v1610
        %v1646 = vsel %vm399, %v1628, %v1612
        %v1647 = vsel %vm399, %v1630, %v1614
        %v1648 = vsel %vm399, %v1632, %v1616
        %1649 = vrot.lane.b32.xlu0 %v1641, 1
        %v1650 = vpop.permute.xlu0 %1649
        %1651 = vrot.lane.b32.xlu0 %v1642, 1
        %v1652 = vpop.permute.xlu0 %1651
        %1653 = vrot.lane.b32.xlu0 %v1643, 1
        %v1654 = vpop.permute.xlu0 %1653
        %1655 = vrot.lane.b32.xlu0 %v1644, 1
        %v1656 = vpop.permute.xlu0 %1655
        %1657 = vrot.lane.b32.xlu0 %v1645, 1
        %v1658 = vpop.permute.xlu0 %1657
        %1659 = vrot.lane.b32.xlu0 %v1646, 1
        %v1660 = vpop.permute.xlu0 %1659
        %1661 = vrot.lane.b32.xlu0 %v1647, 1
        %v1662 = vpop.permute.xlu0 %1661
        %1663 = vrot.lane.b32.xlu0 %v1648, 1
        %v1664 = vpop.permute.xlu0 %1663
        %1665 = vrot.lane.b32.xlu0 %v1633, 1
        %v1666 = vpop.permute.xlu0 %1665
        %1667 = vrot.lane.b32.xlu0 %v1634, 1
        %v1668 = vpop.permute.xlu0 %1667
        %1669 = vrot.lane.b32.xlu0 %v1635, 1
        %v1670 = vpop.permute.xlu0 %1669
        %1671 = vrot.lane.b32.xlu0 %v1636, 1
        %v1672 = vpop.permute.xlu0 %1671
        %1673 = vrot.lane.b32.xlu0 %v1637, 1
        %v1674 = vpop.permute.xlu0 %1673
        %1675 = vrot.lane.b32.xlu0 %v1638, 1
        %v1676 = vpop.permute.xlu0 %1675
        %1677 = vrot.lane.b32.xlu0 %v1639, 1
        %v1678 = vpop.permute.xlu0 %1677
        %1679 = vrot.lane.b32.xlu0 %v1640, 1
        %v1680 = vpop.permute.xlu0 %1679
        %v1681 = vsel %vm448, %v1650, %v1666
        %v1682 = vsel %vm448, %v1652, %v1668
        %v1683 = vsel %vm448, %v1654, %v1670
        %v1684 = vsel %vm448, %v1656, %v1672
        %v1685 = vsel %vm448, %v1658, %v1674
        %v1686 = vsel %vm448, %v1660, %v1676
        %v1687 = vsel %vm448, %v1662, %v1678
        %v1688 = vsel %vm448, %v1664, %v1680
        %v1689 = vsel %vm448, %v1666, %v1650
        %v1690 = vsel %vm448, %v1668, %v1652
        %v1691 = vsel %vm448, %v1670, %v1654
        %v1692 = vsel %vm448, %v1672, %v1656
        %v1693 = vsel %vm448, %v1674, %v1658
        %v1694 = vsel %vm448, %v1676, %v1660
        %v1695 = vsel %vm448, %v1678, %v1662
        %v1696 = vsel %vm448, %v1680, %v1664
        %v1697 = vmul.f32 %v1689, %v329
        %v1698 = vmul.f32 %v1681, %v330
        %v1699 = vmul.f32 %v1690, %v329
        %v1700 = vmul.f32 %v1682, %v330
        %v1701 = vmul.f32 %v1691, %v329
        %v1702 = vmul.f32 %v1683, %v330
        %v1703 = vmul.f32 %v1692, %v329
        %v1704 = vmul.f32 %v1684, %v330
        %v1705 = vmul.f32 %v1693, %v329
        %v1706 = vmul.f32 %v1685, %v330
        %v1707 = vmul.f32 %v1694, %v329
        %v1708 = vmul.f32 %v1686, %v330
        %v1709 = vmul.f32 %v1695, %v329
        %v1710 = vmul.f32 %v1687, %v330
        %v1711 = vmul.f32 %v1696, %v329
        %v1712 = vmul.f32 %v1688, %v330
        %1713 = vrot.lane.b32.xlu0 %v1641, 127
        %v1714 = vpop.permute.xlu0 %1713
        %1715 = vrot.lane.b32.xlu0 %v1642, 127
        %v1716 = vpop.permute.xlu0 %1715
        %1717 = vrot.lane.b32.xlu0 %v1643, 127
        %v1718 = vpop.permute.xlu0 %1717
        %1719 = vrot.lane.b32.xlu0 %v1644, 127
        %v1720 = vpop.permute.xlu0 %1719
        %1721 = vrot.lane.b32.xlu0 %v1645, 127
        %v1722 = vpop.permute.xlu0 %1721
        %1723 = vrot.lane.b32.xlu0 %v1646, 127
        %v1724 = vpop.permute.xlu0 %1723
        %1725 = vrot.lane.b32.xlu0 %v1647, 127
        %v1726 = vpop.permute.xlu0 %1725
        %1727 = vrot.lane.b32.xlu0 %v1648, 127
        %v1728 = vpop.permute.xlu0 %1727
        %1729 = vrot.lane.b32.xlu0 %v1633, 127
        %v1730 = vpop.permute.xlu0 %1729
        %1731 = vrot.lane.b32.xlu0 %v1634, 127
        %v1732 = vpop.permute.xlu0 %1731
        %1733 = vrot.lane.b32.xlu0 %v1635, 127
        %v1734 = vpop.permute.xlu0 %1733
        %1735 = vrot.lane.b32.xlu0 %v1636, 127
        %v1736 = vpop.permute.xlu0 %1735
        %1737 = vrot.lane.b32.xlu0 %v1637, 127
        %v1738 = vpop.permute.xlu0 %1737
        %1739 = vrot.lane.b32.xlu0 %v1638, 127
        %v1740 = vpop.permute.xlu0 %1739
        %1741 = vrot.lane.b32.xlu0 %v1639, 127
        %v1742 = vpop.permute.xlu0 %1741
        %1743 = vrot.lane.b32.xlu0 %v1640, 127
        %v1744 = vpop.permute.xlu0 %1743
        %v1745 = vsel %vm513, %v1714, %v1730
        %v1746 = vsel %vm513, %v1716, %v1732
        %v1747 = vsel %vm513, %v1718, %v1734
        %v1748 = vsel %vm513, %v1720, %v1736
        %v1749 = vsel %vm513, %v1722, %v1738
        %v1750 = vsel %vm513, %v1724, %v1740
        %v1751 = vsel %vm513, %v1726, %v1742
        %v1752 = vsel %vm513, %v1728, %v1744
        %v1753 = vsel %vm513, %v1730, %v1714
        %v1754 = vsel %vm513, %v1732, %v1716
        %v1755 = vsel %vm513, %v1734, %v1718
        %v1756 = vsel %vm513, %v1736, %v1720
        %v1757 = vsel %vm513, %v1738, %v1722
        %v1758 = vsel %vm513, %v1740, %v1724
        %v1759 = vsel %vm513, %v1742, %v1726
        %v1760 = vsel %vm513, %v1744, %v1728
        %v1761 = vmul.f32 %v1745, %v333
        %v1762 = vmul.f32 %v1753, %v334
        %v1763 = vmul.f32 %v1746, %v333
        %v1764 = vmul.f32 %v1754, %v334
        %v1765 = vmul.f32 %v1747, %v333
        %v1766 = vmul.f32 %v1755, %v334
        %v1767 = vmul.f32 %v1748, %v333
        %v1768 = vmul.f32 %v1756, %v334
        %v1769 = vmul.f32 %v1749, %v333
        %v1770 = vmul.f32 %v1757, %v334
        %v1771 = vmul.f32 %v1750, %v333
        %v1772 = vmul.f32 %v1758, %v334
        %v1773 = vmul.f32 %v1751, %v333
        %v1774 = vmul.f32 %v1759, %v334
        %v1775 = vmul.f32 %v1752, %v333
        %v1776 = vmul.f32 %v1760, %v334
        %v1777 = vld [vmem:[#allocation8] sm:$0xf]
        %v1780 = vunpack.c.l.s4 1983009808
        %v1781 = vunpack.c.0.s8 %v1780
        %v1782 = vlaneseq
        %v1783 = vshrl.u32 %v1782, 7
        %v1784 = vsub.s32 %v1781, %v1783
        %v1785 = vrot.slane %v1777, %v1784
        %v1786 = vcombine.high %v1785, %v1785
        %v1788 = vsel %vm614, %v1786, 0
        %1790 = vmatprep.subr.mxu0 %v1698
        %1791 = vmatpush1.msra.mxu0 %v1697
        %1792 = vmatprep.subr.mxu0 %v1700
        %1793 = vmatpush1.msra.mxu0 %v1699
        %1794 = vmatprep.subr.mxu0 %v1702
        %1795 = vmatpush1.msra.mxu0 %v1701
        %1796 = vmatprep.subr.mxu0 %v1704
        %1797 = vmatpush1.msra.mxu0 %v1703
        %1798 = vmatprep.subr.mxu0 %v1706
        %1799 = vmatpush1.msra.mxu0 %v1705
        %1800 = vmatprep.subr.mxu0 %v1708
        %1801 = vmatpush1.msra.mxu0 %v1707
        %1802 = vmatprep.subr.mxu0 %v1710
        %1803 = vmatpush1.msra.mxu0 %v1709
        %1804 = vmatprep.subr.mxu0 %v1712
        %1805 = vmatpush1.msra.mxu0 %v1711
        %1806 = vmatprep.subr.mxu0 %v1633
        %1807 = vmatpush1.msra.mxu0 %v1641
        %1808 = vmatprep.subr.mxu0 %v1634
        %1809 = vmatpush1.msra.mxu0 %v1642
        %1810 = vmatprep.subr.mxu0 %v1635
        %1811 = vmatpush1.msra.mxu0 %v1643
        %1812 = vmatprep.subr.mxu0 %v1636
        %1813 = vmatpush1.msra.mxu0 %v1644
        %1814 = vmatprep.subr.mxu0 %v1637
        %1815 = vmatpush1.msra.mxu0 %v1645
        %1816 = vmatprep.subr.mxu0 %v1638
        %1817 = vmatpush1.msra.mxu0 %v1646
        %1818 = vmatprep.subr.mxu0 %v1639
        %1819 = vmatpush1.msra.mxu0 %v1647
        %1820 = vmatprep.subr.mxu0 %v1640
        %1821 = vmatpush1.msra.mxu0 %v1648
        %1822 = vmatprep.subr.mxu0 %v1762
        %1823 = vmatpush1.msra.mxu0 %v1761
        %1824 = vmatprep.subr.mxu0 %v1764
        %1825 = vmatpush1.msra.mxu0 %v1763
        %1826 = vmatprep.subr.mxu0 %v1766
        %1827 = vmatpush1.msra.mxu0 %v1765
        %1828 = vmatprep.subr.mxu0 %v1768
        %1829 = vmatpush1.msra.mxu0 %v1767
        %1830 = vmatprep.subr.mxu0 %v1770
        %1831 = vmatpush1.msra.mxu0 %v1769
        %1832 = vmatprep.subr.mxu0 %v1772
        %1833 = vmatpush1.msra.mxu0 %v1771
        %1834 = vmatprep.subr.mxu0 %v1774
        %1835 = vmatpush1.msra.mxu0 %v1773
        %1836 = vmatprep.subr.mxu0 %v1776
        %1837 = vmatpush1.msra.mxu0 %v1775
        %1838 = vmatprep.subr.mxu0 0.0
        %1839 = vmatpush1.msra.mxu0 0.0
        %1840 = vmatprep.subr.mxu0 0.0
        %1841 = vmatpush1.msra.mxu0 0.0
        %1842 = vmatprep.subr.mxu0 0.0
        %1843 = vmatpush1.msra.mxu0 0.0
        %1844 = vmatprep.subr.mxu0 0.0
        %1845 = vmatpush1.msra.mxu0 0.0
        %1846 = vmatprep.subr.mxu0 0.0
        %1847 = vmatpush1.msra.mxu0 0.0
        %1848 = vmatprep.subr.mxu0 0.0
        %1849 = vmatpush1.msra.mxu0 0.0
        %1850 = vmatprep.subr.mxu0 0.0
        %1851 = vmatpush1.msra.mxu0 0.0
        %1852 = vmatprep.subr.mxu0 0.0
        %1853 = vmatpush1.msra.mxu0 0.0
        %1854 = vmatprep.mubr.f32.mxu0 %v1788
        %1855 = vmatmul.mubr.f32.gmra.mrb[0].mxu0 %v1785
        %v1856 = vpop.f32.mrb[0].mxu0
        %v1857 = vadd.f32 0.0, %v1856
        %v1858 = vpop.f32.mrb[0].mxu0
        %v1859 = vadd.f32 0.0, %v1858
        %1860 = vdwg.mxu0
        %v1861 = vmul.f32 %v1857, %v337
        %v1862 = vmul.f32 %v1859, %v338
        %1863 = vrot.lane.b32.xlu0 %v1585, 1
        %v1864 = vpop.permute.xlu0 %1863
        %1865 = vrot.lane.b32.xlu0 %v1587, 1
        %v1866 = vpop.permute.xlu0 %1865
        %1867 = vrot.lane.b32.xlu0 %v1589, 1
        %v1868 = vpop.permute.xlu0 %1867
        %1869 = vrot.lane.b32.xlu0 %v1591, 1
        %v1870 = vpop.permute.xlu0 %1869
        %1871 = vrot.lane.b32.xlu0 %v1593, 1
        %v1872 = vpop.permute.xlu0 %1871
        %1873 = vrot.lane.b32.xlu0 %v1595, 1
        %v1874 = vpop.permute.xlu0 %1873
        %1875 = vrot.lane.b32.xlu0 %v1597, 1
        %v1876 = vpop.permute.xlu0 %1875
        %1877 = vrot.lane.b32.xlu0 %v1599, 1
        %v1878 = vpop.permute.xlu0 %1877
        %1879 = vrot.lane.b32.xlu0 %v1586, 1
        %v1880 = vpop.permute.xlu0 %1879
        %1881 = vrot.lane.b32.xlu0 %v1588, 1
        %v1882 = vpop.permute.xlu0 %1881
        %1883 = vrot.lane.b32.xlu0 %v1590, 1
        %v1884 = vpop.permute.xlu0 %1883
        %1885 = vrot.lane.b32.xlu0 %v1592, 1
        %v1886 = vpop.permute.xlu0 %1885
        %1887 = vrot.lane.b32.xlu0 %v1594, 1
        %v1888 = vpop.permute.xlu0 %1887
        %1889 = vrot.lane.b32.xlu0 %v1596, 1
        %v1890 = vpop.permute.xlu0 %1889
        %1891 = vrot.lane.b32.xlu0 %v1598, 1
        %v1892 = vpop.permute.xlu0 %1891
        %1893 = vrot.lane.b32.xlu0 %v1600, 1
        %v1894 = vpop.permute.xlu0 %1893
        %v1895 = vsel %vm448, %v1864, %v1880
        %v1896 = vsel %vm448, %v1866, %v1882
        %v1897 = vsel %vm448, %v1868, %v1884
        %v1898 = vsel %vm448, %v1870, %v1886
        %v1899 = vsel %vm448, %v1872, %v1888
        %v1900 = vsel %vm448, %v1874, %v1890
        %v1901 = vsel %vm448, %v1876, %v1892
        %v1902 = vsel %vm448, %v1878, %v1894
        %v1903 = vsel %vm448, %v1880, %v1864
        %v1904 = vsel %vm448, %v1882, %v1866
        %v1905 = vsel %vm448, %v1884, %v1868
        %v1906 = vsel %vm448, %v1886, %v1870
        %v1907 = vsel %vm448, %v1888, %v1872
        %v1908 = vsel %vm448, %v1890, %v1874
        %v1909 = vsel %vm448, %v1892, %v1876
        %v1910 = vsel %vm448, %v1894, %v1878
        %v1911 = vmul.f32 %v1903, %v329
        %v1912 = vmul.f32 %v1895, %v330
        %v1913 = vmul.f32 %v1904, %v329
        %v1914 = vmul.f32 %v1896, %v330
        %v1915 = vmul.f32 %v1905, %v329
        %v1916 = vmul.f32 %v1897, %v330
        %v1917 = vmul.f32 %v1906, %v329
        %v1918 = vmul.f32 %v1898, %v330
        %v1919 = vmul.f32 %v1907, %v329
        %v1920 = vmul.f32 %v1899, %v330
        %v1921 = vmul.f32 %v1908, %v329
        %v1922 = vmul.f32 %v1900, %v330
        %v1923 = vmul.f32 %v1909, %v329
        %v1924 = vmul.f32 %v1901, %v330
        %v1925 = vmul.f32 %v1910, %v329
        %v1926 = vmul.f32 %v1902, %v330
        %1927 = vrot.lane.b32.xlu0 %v1585, 127
        %v1928 = vpop.permute.xlu0 %1927
        %1929 = vrot.lane.b32.xlu0 %v1587, 127
        %v1930 = vpop.permute.xlu0 %1929
        %1931 = vrot.lane.b32.xlu0 %v1589, 127
        %v1932 = vpop.permute.xlu0 %1931
        %1933 = vrot.lane.b32.xlu0 %v1591, 127
        %v1934 = vpop.permute.xlu0 %1933
        %1935 = vrot.lane.b32.xlu0 %v1593, 127
        %v1936 = vpop.permute.xlu0 %1935
        %1937 = vrot.lane.b32.xlu0 %v1595, 127
        %v1938 = vpop.permute.xlu0 %1937
        %1939 = vrot.lane.b32.xlu0 %v1597, 127
        %v1940 = vpop.permute.xlu0 %1939
        %1941 = vrot.lane.b32.xlu0 %v1599, 127
        %v1942 = vpop.permute.xlu0 %1941
        %1943 = vrot.lane.b32.xlu0 %v1586, 127
        %v1944 = vpop.permute.xlu0 %1943
        %1945 = vrot.lane.b32.xlu0 %v1588, 127
        %v1946 = vpop.permute.xlu0 %1945
        %1947 = vrot.lane.b32.xlu0 %v1590, 127
        %v1948 = vpop.permute.xlu0 %1947
        %1949 = vrot.lane.b32.xlu0 %v1592, 127
        %v1950 = vpop.permute.xlu0 %1949
        %1951 = vrot.lane.b32.xlu0 %v1594, 127
        %v1952 = vpop.permute.xlu0 %1951
        %1953 = vrot.lane.b32.xlu0 %v1596, 127
        %v1954 = vpop.permute.xlu0 %1953
        %1955 = vrot.lane.b32.xlu0 %v1598, 127
        %v1956 = vpop.permute.xlu0 %1955
        %1957 = vrot.lane.b32.xlu0 %v1600, 127
        %v1958 = vpop.permute.xlu0 %1957
        %v1959 = vsel %vm513, %v1928, %v1944
        %v1960 = vsel %vm513, %v1930, %v1946
        %v1961 = vsel %vm513, %v1932, %v1948
        %v1962 = vsel %vm513, %v1934, %v1950
        %v1963 = vsel %vm513, %v1936, %v1952
        %v1964 = vsel %vm513, %v1938, %v1954
        %v1965 = vsel %vm513, %v1940, %v1956
        %v1966 = vsel %vm513, %v1942, %v1958
        %v1967 = vsel %vm513, %v1944, %v1928
        %v1968 = vsel %vm513, %v1946, %v1930
        %v1969 = vsel %vm513, %v1948, %v1932
        %v1970 = vsel %vm513, %v1950, %v1934
        %v1971 = vsel %vm513, %v1952, %v1936
        %v1972 = vsel %vm513, %v1954, %v1938
        %v1973 = vsel %vm513, %v1956, %v1940
        %v1974 = vsel %vm513, %v1958, %v1942
        %v1975 = vmul.f32 %v1959, %v333
        %v1976 = vmul.f32 %v1967, %v334
        %v1977 = vmul.f32 %v1960, %v333
        %v1978 = vmul.f32 %v1968, %v334
        %v1979 = vmul.f32 %v1961, %v333
        %v1980 = vmul.f32 %v1969, %v334
        %v1981 = vmul.f32 %v1962, %v333
        %v1982 = vmul.f32 %v1970, %v334
        %v1983 = vmul.f32 %v1963, %v333
        %v1984 = vmul.f32 %v1971, %v334
        %v1985 = vmul.f32 %v1964, %v333
        %v1986 = vmul.f32 %v1972, %v334
        %v1987 = vmul.f32 %v1965, %v333
        %v1988 = vmul.f32 %v1973, %v334
        %v1989 = vmul.f32 %v1966, %v333
        %v1990 = vmul.f32 %v1974, %v334
        %s1991 = scalar_lea.vmem [#allocation8], 4
        %v1992 = vld [vmem:[%s1991] sm:$0xf]
        %v1995 = vunpack.c.l.s4 1983009808
        %v1996 = vunpack.c.0.s8 %v1995
        %v1997 = vlaneseq
        %v1998 = vshrl.u32 %v1997, 7
        %v1999 = vsub.s32 %v1996, %v1998
        %v2000 = vrot.slane %v1992, %v1999
        %v2001 = vcombine.high %v2000, %v2000
        %v2003 = vsel %vm614, %v2001, 0
        %2005 = vmatprep.subr.mxu0 %v1912
        %2006 = vmatpush1.msra.mxu0 %v1911
        %2007 = vmatprep.subr.mxu0 %v1914
        %2008 = vmatpush1.msra.mxu0 %v1913
        %2009 = vmatprep.subr.mxu0 %v1916
        %2010 = vmatpush1.msra.mxu0 %v1915
        %2011 = vmatprep.subr.mxu0 %v1918
        %2012 = vmatpush1.msra.mxu0 %v1917
        %2013 = vmatprep.subr.mxu0 %v1920
        %2014 = vmatpush1.msra.mxu0 %v1919
        %2015 = vmatprep.subr.mxu0 %v1922
        %2016 = vmatpush1.msra.mxu0 %v1921
        %2017 = vmatprep.subr.mxu0 %v1924
        %2018 = vmatpush1.msra.mxu0 %v1923
        %2019 = vmatprep.subr.mxu0 %v1926
        %2020 = vmatpush1.msra.mxu0 %v1925
        %2021 = vmatprep.subr.mxu0 %v1586
        %2022 = vmatpush1.msra.mxu0 %v1585
        %2023 = vmatprep.subr.mxu0 %v1588
        %2024 = vmatpush1.msra.mxu0 %v1587
        %2025 = vmatprep.subr.mxu0 %v1590
        %2026 = vmatpush1.msra.mxu0 %v1589
        %2027 = vmatprep.subr.mxu0 %v1592
        %2028 = vmatpush1.msra.mxu0 %v1591
        %2029 = vmatprep.subr.mxu0 %v1594
        %2030 = vmatpush1.msra.mxu0 %v1593
        %2031 = vmatprep.subr.mxu0 %v1596
        %2032 = vmatpush1.msra.mxu0 %v1595
        %2033 = vmatprep.subr.mxu0 %v1598
        %2034 = vmatpush1.msra.mxu0 %v1597
        %2035 = vmatprep.subr.mxu0 %v1600
        %2036 = vmatpush1.msra.mxu0 %v1599
        %2037 = vmatprep.subr.mxu0 %v1976
        %2038 = vmatpush1.msra.mxu0 %v1975
        %2039 = vmatprep.subr.mxu0 %v1978
        %2040 = vmatpush1.msra.mxu0 %v1977
        %2041 = vmatprep.subr.mxu0 %v1980
        %2042 = vmatpush1.msra.mxu0 %v1979
        %2043 = vmatprep.subr.mxu0 %v1982
        %2044 = vmatpush1.msra.mxu0 %v1981
        %2045 = vmatprep.subr.mxu0 %v1984
        %2046 = vmatpush1.msra.mxu0 %v1983
        %2047 = vmatprep.subr.mxu0 %v1986
        %2048 = vmatpush1.msra.mxu0 %v1985
        %2049 = vmatprep.subr.mxu0 %v1988
        %2050 = vmatpush1.msra.mxu0 %v1987
        %2051 = vmatprep.subr.mxu0 %v1990
        %2052 = vmatpush1.msra.mxu0 %v1989
        %2053 = vmatprep.subr.mxu0 0.0
        %2054 = vmatpush1.msra.mxu0 0.0
        %2055 = vmatprep.subr.mxu0 0.0
        %2056 = vmatpush1.msra.mxu0 0.0
        %2057 = vmatprep.subr.mxu0 0.0
        %2058 = vmatpush1.msra.mxu0 0.0
        %2059 = vmatprep.subr.mxu0 0.0
        %2060 = vmatpush1.msra.mxu0 0.0
        %2061 = vmatprep.subr.mxu0 0.0
        %2062 = vmatpush1.msra.mxu0 0.0
        %2063 = vmatprep.subr.mxu0 0.0
        %2064 = vmatpush1.msra.mxu0 0.0
        %2065 = vmatprep.subr.mxu0 0.0
        %2066 = vmatpush1.msra.mxu0 0.0
        %2067 = vmatprep.subr.mxu0 0.0
        %2068 = vmatpush1.msra.mxu0 0.0
        %2069 = vmatprep.mubr.f32.mxu0 %v2003
        %2070 = vmatmul.mubr.f32.gmra.mrb[0].mxu0 %v2000
        %v2071 = vpop.f32.mrb[0].mxu0
        %v2072 = vadd.f32 0.0, %v2071
        %v2073 = vpop.f32.mrb[0].mxu0
        %v2074 = vadd.f32 0.0, %v2073
        %2075 = vdwg.mxu0
        %v2076 = vadd.f32 %v1861, %v2072
        %v2077 = vadd.f32 %v1862, %v2074
        %2078 = vrot.lane.b32.xlu0 %v1585, 112
        %v2079 = vpop.permute.xlu0 %2078
        %2080 = vrot.lane.b32.xlu0 %v1587, 112
        %v2081 = vpop.permute.xlu0 %2080
        %2082 = vrot.lane.b32.xlu0 %v1589, 112
        %v2083 = vpop.permute.xlu0 %2082
        %2084 = vrot.lane.b32.xlu0 %v1591, 112
        %v2085 = vpop.permute.xlu0 %2084
        %2086 = vrot.lane.b32.xlu0 %v1593, 112
        %v2087 = vpop.permute.xlu0 %2086
        %2088 = vrot.lane.b32.xlu0 %v1595, 112
        %v2089 = vpop.permute.xlu0 %2088
        %2090 = vrot.lane.b32.xlu0 %v1597, 112
        %v2091 = vpop.permute.xlu0 %2090
        %2092 = vrot.lane.b32.xlu0 %v1599, 112
        %v2093 = vpop.permute.xlu0 %2092
        %2094 = vrot.lane.b32.xlu0 %v1586, 112
        %v2095 = vpop.permute.xlu0 %2094
        %2096 = vrot.lane.b32.xlu0 %v1588, 112
        %v2097 = vpop.permute.xlu0 %2096
        %2098 = vrot.lane.b32.xlu0 %v1590, 112
        %v2099 = vpop.permute.xlu0 %2098
        %2100 = vrot.lane.b32.xlu0 %v1592, 112
        %v2101 = vpop.permute.xlu0 %2100
        %2102 = vrot.lane.b32.xlu0 %v1594, 112
        %v2103 = vpop.permute.xlu0 %2102
        %2104 = vrot.lane.b32.xlu0 %v1596, 112
        %v2105 = vpop.permute.xlu0 %2104
        %2106 = vrot.lane.b32.xlu0 %v1598, 112
        %v2107 = vpop.permute.xlu0 %2106
        %2108 = vrot.lane.b32.xlu0 %v1600, 112
        %v2109 = vpop.permute.xlu0 %2108
        %v2110 = vsel %vm1046, %v2079, %v2095
        %v2111 = vsel %vm1046, %v2081, %v2097
        %v2112 = vsel %vm1046, %v2083, %v2099
        %v2113 = vsel %vm1046, %v2085, %v2101
        %v2114 = vsel %vm1046, %v2087, %v2103
        %v2115 = vsel %vm1046, %v2089, %v2105
        %v2116 = vsel %vm1046, %v2091, %v2107
        %v2117 = vsel %vm1046, %v2093, %v2109
        %v2118 = vsel %vm1046, %v2095, %v2079
        %v2119 = vsel %vm1046, %v2097, %v2081
        %v2120 = vsel %vm1046, %v2099, %v2083
        %v2121 = vsel %vm1046, %v2101, %v2085
        %v2122 = vsel %vm1046, %v2103, %v2087
        %v2123 = vsel %vm1046, %v2105, %v2089
        %v2124 = vsel %vm1046, %v2107, %v2091
        %v2125 = vsel %vm1046, %v2109, %v2093
        %2126 = vrot.lane.b32.xlu0 %v2110, 1
        %v2127 = vpop.permute.xlu0 %2126
        %2128 = vrot.lane.b32.xlu0 %v2111, 1
        %v2129 = vpop.permute.xlu0 %2128
        %2130 = vrot.lane.b32.xlu0 %v2112, 1
        %v2131 = vpop.permute.xlu0 %2130
        %2132 = vrot.lane.b32.xlu0 %v2113, 1
        %v2133 = vpop.permute.xlu0 %2132
        %2134 = vrot.lane.b32.xlu0 %v2114, 1
        %v2135 = vpop.permute.xlu0 %2134
        %2136 = vrot.lane.b32.xlu0 %v2115, 1
        %v2137 = vpop.permute.xlu0 %2136
        %2138 = vrot.lane.b32.xlu0 %v2116, 1
        %v2139 = vpop.permute.xlu0 %2138
        %2140 = vrot.lane.b32.xlu0 %v2117, 1
        %v2141 = vpop.permute.xlu0 %2140
        %2142 = vrot.lane.b32.xlu0 %v2118, 1
        %v2143 = vpop.permute.xlu0 %2142
        %2144 = vrot.lane.b32.xlu0 %v2119, 1
        %v2145 = vpop.permute.xlu0 %2144
        %2146 = vrot.lane.b32.xlu0 %v2120, 1
        %v2147 = vpop.permute.xlu0 %2146
        %2148 = vrot.lane.b32.xlu0 %v2121, 1
        %v2149 = vpop.permute.xlu0 %2148
        %2150 = vrot.lane.b32.xlu0 %v2122, 1
        %v2151 = vpop.permute.xlu0 %2150
        %2152 = vrot.lane.b32.xlu0 %v2123, 1
        %v2153 = vpop.permute.xlu0 %2152
        %2154 = vrot.lane.b32.xlu0 %v2124, 1
        %v2155 = vpop.permute.xlu0 %2154
        %2156 = vrot.lane.b32.xlu0 %v2125, 1
        %v2157 = vpop.permute.xlu0 %2156
        %v2158 = vsel %vm448, %v2127, %v2143
        %v2159 = vsel %vm448, %v2129, %v2145
        %v2160 = vsel %vm448, %v2131, %v2147
        %v2161 = vsel %vm448, %v2133, %v2149
        %v2162 = vsel %vm448, %v2135, %v2151
        %v2163 = vsel %vm448, %v2137, %v2153
        %v2164 = vsel %vm448, %v2139, %v2155
        %v2165 = vsel %vm448, %v2141, %v2157
        %v2166 = vsel %vm448, %v2143, %v2127
        %v2167 = vsel %vm448, %v2145, %v2129
        %v2168 = vsel %vm448, %v2147, %v2131
        %v2169 = vsel %vm448, %v2149, %v2133
        %v2170 = vsel %vm448, %v2151, %v2135
        %v2171 = vsel %vm448, %v2153, %v2137
        %v2172 = vsel %vm448, %v2155, %v2139
        %v2173 = vsel %vm448, %v2157, %v2141
        %v2174 = vmul.f32 %v2166, %v329
        %v2175 = vmul.f32 %v2158, %v330
        %v2176 = vmul.f32 %v2167, %v329
        %v2177 = vmul.f32 %v2159, %v330
        %v2178 = vmul.f32 %v2168, %v329
        %v2179 = vmul.f32 %v2160, %v330
        %v2180 = vmul.f32 %v2169, %v329
        %v2181 = vmul.f32 %v2161, %v330
        %v2182 = vmul.f32 %v2170, %v329
        %v2183 = vmul.f32 %v2162, %v330
        %v2184 = vmul.f32 %v2171, %v329
        %v2185 = vmul.f32 %v2163, %v330
        %v2186 = vmul.f32 %v2172, %v329
        %v2187 = vmul.f32 %v2164, %v330
        %v2188 = vmul.f32 %v2173, %v329
        %v2189 = vmul.f32 %v2165, %v330
        %2190 = vrot.lane.b32.xlu0 %v2110, 127
        %v2191 = vpop.permute.xlu0 %2190
        %2192 = vrot.lane.b32.xlu0 %v2111, 127
        %v2193 = vpop.permute.xlu0 %2192
        %2194 = vrot.lane.b32.xlu0 %v2112, 127
        %v2195 = vpop.permute.xlu0 %2194
        %2196 = vrot.lane.b32.xlu0 %v2113, 127
        %v2197 = vpop.permute.xlu0 %2196
        %2198 = vrot.lane.b32.xlu0 %v2114, 127
        %v2199 = vpop.permute.xlu0 %2198
        %2200 = vrot.lane.b32.xlu0 %v2115, 127
        %v2201 = vpop.permute.xlu0 %2200
        %2202 = vrot.lane.b32.xlu0 %v2116, 127
        %v2203 = vpop.permute.xlu0 %2202
        %2204 = vrot.lane.b32.xlu0 %v2117, 127
        %v2205 = vpop.permute.xlu0 %2204
        %2206 = vrot.lane.b32.xlu0 %v2118, 127
        %v2207 = vpop.permute.xlu0 %2206
        %2208 = vrot.lane.b32.xlu0 %v2119, 127
        %v2209 = vpop.permute.xlu0 %2208
        %2210 = vrot.lane.b32.xlu0 %v2120, 127
        %v2211 = vpop.permute.xlu0 %2210
        %2212 = vrot.lane.b32.xlu0 %v2121, 127
        %v2213 = vpop.permute.xlu0 %2212
        %2214 = vrot.lane.b32.xlu0 %v2122, 127
        %v2215 = vpop.permute.xlu0 %2214
        %2216 = vrot.lane.b32.xlu0 %v2123, 127
        %v2217 = vpop.permute.xlu0 %2216
        %2218 = vrot.lane.b32.xlu0 %v2124, 127
        %v2219 = vpop.permute.xlu0 %2218
        %2220 = vrot.lane.b32.xlu0 %v2125, 127
        %v2221 = vpop.permute.xlu0 %2220
        %v2222 = vsel %vm513, %v2191, %v2207
        %v2223 = vsel %vm513, %v2193, %v2209
        %v2224 = vsel %vm513, %v2195, %v2211
        %v2225 = vsel %vm513, %v2197, %v2213
        %v2226 = vsel %vm513, %v2199, %v2215
        %v2227 = vsel %vm513, %v2201, %v2217
        %v2228 = vsel %vm513, %v2203, %v2219
        %v2229 = vsel %vm513, %v2205, %v2221
        %v2230 = vsel %vm513, %v2207, %v2191
        %v2231 = vsel %vm513, %v2209, %v2193
        %v2232 = vsel %vm513, %v2211, %v2195
        %v2233 = vsel %vm513, %v2213, %v2197
        %v2234 = vsel %vm513, %v2215, %v2199
        %v2235 = vsel %vm513, %v2217, %v2201
        %v2236 = vsel %vm513, %v2219, %v2203
        %v2237 = vsel %vm513, %v2221, %v2205
        %v2238 = vmul.f32 %v2222, %v333
        %v2239 = vmul.f32 %v2230, %v334
        %v2240 = vmul.f32 %v2223, %v333
        %v2241 = vmul.f32 %v2231, %v334
        %v2242 = vmul.f32 %v2224, %v333
        %v2243 = vmul.f32 %v2232, %v334
        %v2244 = vmul.f32 %v2225, %v333
        %v2245 = vmul.f32 %v2233, %v334
        %v2246 = vmul.f32 %v2226, %v333
        %v2247 = vmul.f32 %v2234, %v334
        %v2248 = vmul.f32 %v2227, %v333
        %v2249 = vmul.f32 %v2235, %v334
        %v2250 = vmul.f32 %v2228, %v333
        %v2251 = vmul.f32 %v2236, %v334
        %v2252 = vmul.f32 %v2229, %v333
        %v2253 = vmul.f32 %v2237, %v334
        %s2254 = scalar_lea.vmem [#allocation8], 8
        %v2255 = vld [vmem:[%s2254] sm:$0xf]
        %v2258 = vunpack.c.l.s4 1983009808
        %v2259 = vunpack.c.0.s8 %v2258
        %v2260 = vlaneseq
        %v2261 = vshrl.u32 %v2260, 7
        %v2262 = vsub.s32 %v2259, %v2261
        %v2263 = vrot.slane %v2255, %v2262
        %v2264 = vcombine.high %v2263, %v2263
        %v2266 = vsel %vm614, %v2264, 0
        %2268 = vmatprep.subr.mxu0 %v2175
        %2269 = vmatpush1.msra.mxu0 %v2174
        %2270 = vmatprep.subr.mxu0 %v2177
        %2271 = vmatpush1.msra.mxu0 %v2176
        %2272 = vmatprep.subr.mxu0 %v2179
        %2273 = vmatpush1.msra.mxu0 %v2178
        %2274 = vmatprep.subr.mxu0 %v2181
        %2275 = vmatpush1.msra.mxu0 %v2180
        %2276 = vmatprep.subr.mxu0 %v2183
        %2277 = vmatpush1.msra.mxu0 %v2182
        %2278 = vmatprep.subr.mxu0 %v2185
        %2279 = vmatpush1.msra.mxu0 %v2184
        %2280 = vmatprep.subr.mxu0 %v2187
        %2281 = vmatpush1.msra.mxu0 %v2186
        %2282 = vmatprep.subr.mxu0 %v2189
        %2283 = vmatpush1.msra.mxu0 %v2188
        %2284 = vmatprep.subr.mxu0 %v2118
        %2285 = vmatpush1.msra.mxu0 %v2110
        %2286 = vmatprep.subr.mxu0 %v2119
        %2287 = vmatpush1.msra.mxu0 %v2111
        %2288 = vmatprep.subr.mxu0 %v2120
        %2289 = vmatpush1.msra.mxu0 %v2112
        %2290 = vmatprep.subr.mxu0 %v2121
        %2291 = vmatpush1.msra.mxu0 %v2113
        %2292 = vmatprep.subr.mxu0 %v2122
        %2293 = vmatpush1.msra.mxu0 %v2114
        %2294 = vmatprep.subr.mxu0 %v2123
        %2295 = vmatpush1.msra.mxu0 %v2115
        %2296 = vmatprep.subr.mxu0 %v2124
        %2297 = vmatpush1.msra.mxu0 %v2116
        %2298 = vmatprep.subr.mxu0 %v2125
        %2299 = vmatpush1.msra.mxu0 %v2117
        %2300 = vmatprep.subr.mxu0 %v2239
        %2301 = vmatpush1.msra.mxu0 %v2238
        %2302 = vmatprep.subr.mxu0 %v2241
        %2303 = vmatpush1.msra.mxu0 %v2240
        %2304 = vmatprep.subr.mxu0 %v2243
        %2305 = vmatpush1.msra.mxu0 %v2242
        %2306 = vmatprep.subr.mxu0 %v2245
        %2307 = vmatpush1.msra.mxu0 %v2244
        %2308 = vmatprep.subr.mxu0 %v2247
        %2309 = vmatpush1.msra.mxu0 %v2246
        %2310 = vmatprep.subr.mxu0 %v2249
        %2311 = vmatpush1.msra.mxu0 %v2248
        %2312 = vmatprep.subr.mxu0 %v2251
        %2313 = vmatpush1.msra.mxu0 %v2250
        %2314 = vmatprep.subr.mxu0 %v2253
        %2315 = vmatpush1.msra.mxu0 %v2252
        %2316 = vmatprep.subr.mxu0 0.0
        %2317 = vmatpush1.msra.mxu0 0.0
        %2318 = vmatprep.subr.mxu0 0.0
        %2319 = vmatpush1.msra.mxu0 0.0
        %2320 = vmatprep.subr.mxu0 0.0
        %2321 = vmatpush1.msra.mxu0 0.0
        %2322 = vmatprep.subr.mxu0 0.0
        %2323 = vmatpush1.msra.mxu0 0.0
        %2324 = vmatprep.subr.mxu0 0.0
        %2325 = vmatpush1.msra.mxu0 0.0
        %2326 = vmatprep.subr.mxu0 0.0
        %2327 = vmatpush1.msra.mxu0 0.0
        %2328 = vmatprep.subr.mxu0 0.0
        %2329 = vmatpush1.msra.mxu0 0.0
        %2330 = vmatprep.subr.mxu0 0.0
        %2331 = vmatpush1.msra.mxu0 0.0
        %2332 = vmatprep.mubr.f32.mxu0 %v2266
        %2333 = vmatmul.mubr.f32.gmra.mrb[0].mxu0 %v2263
        %v2334 = vpop.f32.mrb[0].mxu0
        %v2335 = vadd.f32 0.0, %v2334
        %v2336 = vpop.f32.mrb[0].mxu0
        %v2337 = vadd.f32 0.0, %v2336
        %2338 = vdwg.mxu0
        %v2339 = vmul.f32 %v2335, %v341
        %v2340 = vmul.f32 %v2337, %v342
        %v2341 = vadd.f32 %v2076, %v2339
        %v2342 = vadd.f32 %v2077, %v2340
        %v2343 = vld [vmem:[#allocation10] sm:$0x3]
        %2345 = vset.pattern.permute.xlu0 0
        %2346 = vperm.xlu0 %2345, %v2343
        %v2347 = vpop.permute.xlu0 %2346
        %v2349 = vadd.f32 %v2341, %v2347
        %v2350 = vadd.f32 %v2342, %v2347
        %vm2351 = vcmask 1041408
        %v2352 = vsel %vm2351, %v2349, 0.0
        %v2353 = vsel %vm2351, %v2350, 0.0
        %v2354 = vadd.f32 %v2352, %v2353
        %2355 = vadd.xlane.f32.xlu0 %v2354
        %v2356 = vpop.xlane.xlu0 %2355
        %v2357 = vmul.f32 %v2349, %v2349
        %v2358 = vmul.f32 %v2350, %v2350
        %v2359 = vsel %vm2351, %v2357, 0.0
        %v2360 = vsel %vm2351, %v2358, 0.0
        %v2361 = vadd.f32 %v2359, %v2360
        %2362 = vadd.xlane.f32.xlu0 %v2361
        %v2363 = vpop.xlane.xlu0 %2362
        %v2364 = vmul.f32 %v2356, 0.00390625
        %v2365 = vmul.f32 %v2363, 0.00390625
        %v2366 = vmul.f32 %v2364, %v2364
        %v2367 = vsub.f32 %v2365, %v2366
        %v2368 = vsub.f32 %v2349, %v2364
        %v2369 = vsub.f32 %v2350, %v2364
        %v2370 = vadd.f32 %v2367, 1e-05
        %v2371 = vrsqrt.pop %v2370
        %v2372 = vmul.f32 %v2368, %v2371
        %v2373 = vmul.f32 %v2369, %v2371
        %v2374 = vmax.f32 %v2372, 0.0
        %v2375 = vmax.f32 %v2373, 0.0
        %v2378 = vcombine.low %v2374, %v2375
        %v2380 = vunpack.c.l.s4 1983009808
        %v2381 = vunpack.c.0.s8 %v2380
        %v2382 = vlaneseq
        %v2383 = vshrl.u32 %v2382, 7
        %v2384 = vsub.s32 %v2381, %v2383
        %v2385 = vrot.slane %v2378, %v2384
        %2387 = vst [vmem:[%s298] sm:$0xf] %v2385
        %s2388 = sand.u32 %s142, 1
        %s2389 = scalar_lea.sflag [#allocation4], %s2388
        %s2390 = sand.u32 %s142, 1
        %s2391 = smul.addr %s2390, 4
        %s2392 = scalar_lea.vmem [#allocation11], %s2391
        // Predicated region
        $region61: #{tpu_custom_call.1} parent=39 // pred_check
          %p2393 = pneg %p152
        $region62: #{tpu_custom_call.1} parent=39 // pred_check_branch
          %2395 = sbr.rel (%p2393) target = $region64
        $region63: #{tpu_custom_call.1} parent=39 // pred_region
          %s2397 = ssub.s32 64, 64
          %2398 = vsyncadd %s2389, %s2397
          %s2399 = smul.addr %s24, 2
          %s2400 = smul.addr %s2399, 32
          %s2401 = scalar_lea.hbm %s5, %s2400
          %s2403 = sshll.u32 %s2392, 4
          %s2404 = int_to_ptr.vmem [resolvable:$true] %s2403
          %2406 = dma.vmem_to_hbm [thread:$0]  %s2404, 64, %s2401, %s2389
        $region64: #{tpu_custom_call.1} parent=39 // pred_fallthru
          _
      $region40: #{tpu_custom_call.1} parent=5 // pred_fallthru
        _
      %p2407 = scmp.le.s32.totalorder 2, %s19
      // Predicated region
      $region65: #{tpu_custom_call.1} parent=5 // pred_check
        %p2408 = pneg %p2407
      $region66: #{tpu_custom_call.1} parent=5 // pred_check_branch
        %2410 = sbr.rel (%p2408) target = $region68
      $region67: #{tpu_custom_call.1} parent=5 // pred_region
        %s2411 = ssub.s32 %s19, 2
        // Predicated region
        $region69: #{tpu_custom_call.1} parent=67 // pred_check
          %p2412 = pneg %p158
        $region70: #{tpu_custom_call.1} parent=67 // pred_check_branch
          %2414 = sbr.rel (%p2412) target = $region72
        $region71: #{tpu_custom_call.1} parent=67 // pred_region
          %s2415 = sand.u32 %s143, 1
          %s2416 = scalar_lea.sflag [#allocation4], %s2415
          %s2417 = sand.u32 %s143, 1
          %s2418 = smul.addr %s2417, 4
          %s2419 = scalar_lea.vmem [#allocation11], %s2418
          %2420 = dma.done %s2416, 64
        $region72: #{tpu_custom_call.1} parent=67 // pred_fallthru
          _
      $region68: #{tpu_custom_call.1} parent=5 // pred_fallthru
        _
    $region6: #{tpu_custom_call.1} parent=1 // loop_footer
      %s23 = sadd.s32 1, %s19
    $region7: #{tpu_custom_call.1} parent=1 // loop_footer_branch
      %18 = sbr.rel target = $region3
    $region8: #{tpu_custom_call.1} parent=1 // loop_exit
      _
    %2421 = vsyncpa [#allocation3], 1
    %s2422 = scalar_lea.sflag [#allocation3], 1
    %2423 = vsyncpa %s2422, 1
    %2424 = vsyncpa [#allocation6], 1
    %2425 = vsyncpa [#allocation9], 1
    %2426 = vsyncpa [#allocation4], 1
    %s2427 = scalar_lea.sflag [#allocation4], 1
    %2428 = vsyncpa %s2427, 1

</llo_original>
